<compile_context>
chip_gen: v6e
topology: v6e:2x2x1
jax: 0.10.0
libtpu: 0.0.40
codegen_flags: <defaults>
</compile_context>

<pallas_src>
import math

import jax
import jax.numpy as jnp
from jax.experimental import pallas as pl
from jax.experimental.pallas import tpu as pltpu

FEATURE_SIZE = 768
IN_DIM = FEATURE_SIZE + 512   # 1280
H1 = 512
H2 = 256
OUT_DIM = 2
OUT_PAD = 128                 # lane-dense padded output width (multiple of 128)


def _round_up(x, m):
    return ((x + m - 1) // m) * m


def mlp_kernel(x_ref, w1_ref, b1_ref, w2_ref, b2_ref, w3_ref, b3_ref, o_ref):
    # fc1 + ReLU   (bf16 operands, f32 accumulation on the MXU)
    h = jnp.dot(x_ref[...], w1_ref[...], preferred_element_type=jnp.float32)
    h = jnp.maximum(h + b1_ref[...], 0.0)
    # fc2 + ReLU
    h = jnp.dot(h.astype(jnp.bfloat16), w2_ref[...], preferred_element_type=jnp.float32)
    h = jnp.maximum(h + b2_ref[...], 0.0)
    # fc3 (no activation); output block is a lane-dense (TB, 128) slab
    h = jnp.dot(h.astype(jnp.bfloat16), w3_ref[...], preferred_element_type=jnp.float32)
    o_ref[...] = (h + b3_ref[...]).astype(o_ref.dtype)


def regression_model_forward(x, params, *, block_b=256):
    """x: (B, 1280) float32; params: (w1 (1280,512), b1 (1,512), w2 (512,256),
    b2 (1,256), w3 (256,2), b3 (1,2)).  Returns (B, 2) float32."""
    w1, b1, w2, b2, w3, b3 = params
    B = x.shape[0]

    # Batch tile: multiple of 16 (bf16 sublane packing); up to 256 (full v6e/v7x MXU tile).
    TB = min(block_b, _round_up(max(B, 1), 16))
    B_pad = _round_up(B, TB)

    x_p = x if B_pad == B else jnp.pad(x, ((0, B_pad - B), (0, 0)))
    x_p = x_p.astype(jnp.bfloat16)

    w1b = w1.astype(jnp.bfloat16)
    w2b = w2.astype(jnp.bfloat16)
    w3p = jnp.pad(w3, ((0, 0), (0, OUT_PAD - OUT_DIM))).astype(jnp.bfloat16)
    b3p = jnp.pad(b3, ((0, 0), (0, OUT_PAD - OUT_DIM))).astype(jnp.float32)

    grid = (B_pad // TB,)

    weight_bytes = (w1b.size + w2b.size + w3p.size) * 2 + (b1.size + b2.size + b3p.size) * 4
    cost = pl.CostEstimate(
        flops=2 * B_pad * (IN_DIM * H1 + H1 * H2 + H2 * OUT_PAD),
        transcendentals=0,
        bytes_accessed=int(x_p.size * 2 + weight_bytes + B_pad * OUT_PAD * 4),
    )

    out = pl.pallas_call(
        mlp_kernel,
        out_shape=jax.ShapeDtypeStruct((B_pad, OUT_PAD), jnp.float32),
        grid=grid,
        in_specs=[
            pl.BlockSpec((TB, IN_DIM), lambda i: (i, 0)),     # x: pipelined over batch
            pl.BlockSpec((IN_DIM, H1), lambda i: (0, 0)),     # weights/biases: constant
            pl.BlockSpec((1, H1), lambda i: (0, 0)),          #   index_map -> stay resident
            pl.BlockSpec((H1, H2), lambda i: (0, 0)),
            pl.BlockSpec((1, H2), lambda i: (0, 0)),
            pl.BlockSpec((H2, OUT_PAD), lambda i: (0, 0)),
            pl.BlockSpec((1, OUT_PAD), lambda i: (0, 0)),
        ],
        out_specs=pl.BlockSpec((TB, OUT_PAD), lambda i: (i, 0)),
        compiler_params=pltpu.CompilerParams(
            dimension_semantics=("parallel",),   # batch axis: megacore-shardable on v7x
            vmem_limit_bytes=16 << 20,           # working set < 5 MiB; leave headroom
        ),
        cost_estimate=cost,
    )(x_p, w1b, b1.astype(jnp.float32), w2b, b2.astype(jnp.float32), w3p, b3p)

    return out[:B, :OUT_DIM]


def init_linear(key, fan_in, fan_out):
    # Matches torch.nn.Linear default init: U(-1/sqrt(fan_in), 1/sqrt(fan_in))
    kw, kb = jax.random.split(key)
    bound = 1.0 / math.sqrt(fan_in)
    w = jax.random.uniform(kw, (fan_in, fan_out), jnp.float32, -bound, bound)
    b = jax.random.uniform(kb, (1, fan_out), jnp.float32, -bound, bound)
    return w, b


def reference_forward(x, params):
    # Mirrors the kernel's numerics: bf16 matmul operands, f32 accumulation.
    w1, b1, w2, b2, w3, b3 = params
    bf = jnp.bfloat16
    h = jnp.dot(x.astype(bf), w1.astype(bf), preferred_element_type=jnp.float32) + b1
    h = jnp.maximum(h, 0.0)
    h = jnp.dot(h.astype(bf), w2.astype(bf), preferred_element_type=jnp.float32) + b2
    h = jnp.maximum(h, 0.0)
    h = jnp.dot(h.astype(bf), w3.astype(bf), preferred_element_type=jnp.float32) + b3
    return h


if __name__ == "__main__":
    key = jax.random.PRNGKey(0)
    k_x, k1, k2, k3 = jax.random.split(key, 4)

    batch = 8
    x = jax.random.normal(k_x, (batch, IN_DIM), jnp.float32)

    w1, b1 = init_linear(k1, IN_DIM, H1)
    w2, b2 = init_linear(k2, H1, H2)
    w3, b3 = init_linear(k3, H2, OUT_DIM)
    params = (w1, b1, w2, b2, w3, b3)

    out = regression_model_forward(x, params)
    out = jax.block_until_ready(out)

    ref = reference_forward(x, params)
    assert out.shape == (batch, OUT_DIM)
    assert jnp.allclose(out, ref, atol=2e-3, rtol=2e-2), "mismatch vs reference"

    print("KERNEL_OK")
</pallas_src>

<mosaic_0001>
module attributes {stable_mosaic.version = 11 : i64} {
  func.func @mlp_kernel(%arg0: i32, %arg1: memref<16x1280xbf16, #tpu.memory_space<vmem>>, %arg2: memref<1280x512xbf16, #tpu.memory_space<vmem>>, %arg3: memref<1x512xf32, #tpu.memory_space<vmem>>, %arg4: memref<512x256xbf16, #tpu.memory_space<vmem>>, %arg5: memref<1x256xf32, #tpu.memory_space<vmem>>, %arg6: memref<256x128xbf16, #tpu.memory_space<vmem>>, %arg7: memref<1x128xf32, #tpu.memory_space<vmem>>, %arg8: memref<16x128xf32, #tpu.memory_space<vmem>>) attributes {dimension_semantics = [#tpu.dimension_semantics<parallel>], iteration_bounds = array<i64: 1>, scalar_prefetch = 0 : i64, scratch_operands = 0 : i64, tpu.core_type = #tpu.core_type<tc>, window_params = [{transform_indices = @transform_0, window_bounds = array<i64: 16, 1280>}, {pipeline_mode = #tpu.pipeline_mode<synchronous>, transform_indices = @transform_1, window_bounds = array<i64: 1280, 512>}, {pipeline_mode = #tpu.pipeline_mode<synchronous>, transform_indices = @transform_2, window_bounds = array<i64: 1, 512>}, {pipeline_mode = #tpu.pipeline_mode<synchronous>, transform_indices = @transform_3, window_bounds = array<i64: 512, 256>}, {pipeline_mode = #tpu.pipeline_mode<synchronous>, transform_indices = @transform_4, window_bounds = array<i64: 1, 256>}, {pipeline_mode = #tpu.pipeline_mode<synchronous>, transform_indices = @transform_5, window_bounds = array<i64: 256, 128>}, {pipeline_mode = #tpu.pipeline_mode<synchronous>, transform_indices = @transform_6, window_bounds = array<i64: 1, 128>}, {transform_indices = @transform_7, window_bounds = array<i64: 16, 128>}]} {
    %c0 = arith.constant 0 : index
    %c0_0 = arith.constant 0 : index
    %0 = vector.load %arg1[%c0, %c0_0] : memref<16x1280xbf16, #tpu.memory_space<vmem>>, vector<16x1280xbf16>
    %c0_1 = arith.constant 0 : index
    %c0_2 = arith.constant 0 : index
    %1 = vector.load %arg2[%c0_1, %c0_2] : memref<1280x512xbf16, #tpu.memory_space<vmem>>, vector<1280x512xbf16>
    %cst = arith.constant dense<0.000000e+00> : vector<16x512xf32>
    %2 = tpu.matmul %0, %1, %cst {dimension_numbers = #tpu.dot_dimension_numbers<[1], [0], [0], [1], [0, 0, 1, 1], [], []>} : vector<16x1280xbf16>, vector<1280x512xbf16>, vector<16x512xf32> -> vector<16x512xf32>
    %c0_3 = arith.constant 0 : index
    %c0_4 = arith.constant 0 : index
    %3 = vector.load %arg3[%c0_3, %c0_4] : memref<1x512xf32, #tpu.memory_space<vmem>>, vector<1x512xf32>
    %4 = vector.broadcast %3 : vector<1x512xf32> to vector<16x512xf32>
    %5 = arith.addf %2, %4 : vector<16x512xf32>
    %cst_5 = arith.constant 0.000000e+00 : f32
    %6 = vector.broadcast %cst_5 : f32 to vector<16x512xf32>
    %7 = arith.maximumf %5, %6 : vector<16x512xf32>
    %8 = arith.truncf %7 : vector<16x512xf32> to vector<16x512xbf16>
    %c0_6 = arith.constant 0 : index
    %c0_7 = arith.constant 0 : index
    %9 = vector.load %arg4[%c0_6, %c0_7] : memref<512x256xbf16, #tpu.memory_space<vmem>>, vector<512x256xbf16>
    %cst_8 = arith.constant dense<0.000000e+00> : vector<16x256xf32>
    %10 = tpu.matmul %8, %9, %cst_8 {dimension_numbers = #tpu.dot_dimension_numbers<[1], [0], [0], [1], [0, 0, 1, 1], [], []>} : vector<16x512xbf16>, vector<512x256xbf16>, vector<16x256xf32> -> vector<16x256xf32>
    %c0_9 = arith.constant 0 : index
    %c0_10 = arith.constant 0 : index
    %11 = vector.load %arg5[%c0_9, %c0_10] : memref<1x256xf32, #tpu.memory_space<vmem>>, vector<1x256xf32>
    %12 = vector.broadcast %11 : vector<1x256xf32> to vector<16x256xf32>
    %13 = arith.addf %10, %12 : vector<16x256xf32>
    %cst_11 = arith.constant 0.000000e+00 : f32
    %14 = vector.broadcast %cst_11 : f32 to vector<16x256xf32>
    %15 = arith.maximumf %13, %14 : vector<16x256xf32>
    %16 = arith.truncf %15 : vector<16x256xf32> to vector<16x256xbf16>
    %c0_12 = arith.constant 0 : index
    %c0_13 = arith.constant 0 : index
    %17 = vector.load %arg6[%c0_12, %c0_13] : memref<256x128xbf16, #tpu.memory_space<vmem>>, vector<256x128xbf16>
    %cst_14 = arith.constant dense<0.000000e+00> : vector<16x128xf32>
    %18 = tpu.matmul %16, %17, %cst_14 {dimension_numbers = #tpu.dot_dimension_numbers<[1], [0], [0], [1], [0, 0, 1, 1], [], []>} : vector<16x256xbf16>, vector<256x128xbf16>, vector<16x128xf32> -> vector<16x128xf32>
    %c0_15 = arith.constant 0 : index
    %c0_16 = arith.constant 0 : index
    %19 = vector.load %arg7[%c0_15, %c0_16] : memref<1x128xf32, #tpu.memory_space<vmem>>, vector<1x128xf32>
    %20 = vector.broadcast %19 : vector<1x128xf32> to vector<16x128xf32>
    %21 = arith.addf %18, %20 : vector<16x128xf32>
    %c0_17 = arith.constant 0 : index
    %c0_18 = arith.constant 0 : index
    %22 = vector.load %arg8[%c0_17, %c0_18] : memref<16x128xf32, #tpu.memory_space<vmem>>, vector<16x128xf32>
    tpu.vector_store %arg8[%c0_17, %c0_18], %21 {strides = array<i32>} : memref<16x128xf32, #tpu.memory_space<vmem>>, vector<16x128xf32>,
    return
  }
  func.func @transform_0(%arg0: i32) -> (i32, i32) {
    %c0_i32 = arith.constant 0 : i32
    %c0_i32_0 = arith.constant 0 : i32
    return %arg0, %c0_i32 : i32, i32
  }
  func.func @transform_1(%arg0: i32) -> (i32, i32) {
    %c0_i32 = arith.constant 0 : i32
    %c0_i32_0 = arith.constant 0 : i32
    %c0_i32_1 = arith.constant 0 : i32
    return %c0_i32, %c0_i32_0 : i32, i32
  }
  func.func @transform_2(%arg0: i32) -> (i32, i32) {
    %c0_i32 = arith.constant 0 : i32
    %c0_i32_0 = arith.constant 0 : i32
    %c0_i32_1 = arith.constant 0 : i32
    return %c0_i32, %c0_i32_0 : i32, i32
  }
  func.func @transform_3(%arg0: i32) -> (i32, i32) {
    %c0_i32 = arith.constant 0 : i32
    %c0_i32_0 = arith.constant 0 : i32
    %c0_i32_1 = arith.constant 0 : i32
    return %c0_i32, %c0_i32_0 : i32, i32
  }
  func.func @transform_4(%arg0: i32) -> (i32, i32) {
    %c0_i32 = arith.constant 0 : i32
    %c0_i32_0 = arith.constant 0 : i32
    %c0_i32_1 = arith.constant 0 : i32
    return %c0_i32, %c0_i32_0 : i32, i32
  }
  func.func @transform_5(%arg0: i32) -> (i32, i32) {
    %c0_i32 = arith.constant 0 : i32
    %c0_i32_0 = arith.constant 0 : i32
    %c0_i32_1 = arith.constant 0 : i32
    return %c0_i32, %c0_i32_0 : i32, i32
  }
  func.func @transform_6(%arg0: i32) -> (i32, i32) {
    %c0_i32 = arith.constant 0 : i32
    %c0_i32_0 = arith.constant 0 : i32
    %c0_i32_1 = arith.constant 0 : i32
    return %c0_i32, %c0_i32_0 : i32, i32
  }
  func.func @transform_7(%arg0: i32) -> (i32, i32) {
    %c0_i32 = arith.constant 0 : i32
    %c0_i32_0 = arith.constant 0 : i32
    return %arg0, %c0_i32 : i32, i32
  }
}

</mosaic_0001>

<llo_original>
// kernel: tpu_custom_call.1
$region0: #{tpu_custom_call.1}
  #allocation0 [shape = 'u32[]', space=smem, size = 0x4, offset = 0x4, fixed_abs, tag = 'smem constant byte address 0x4 - core index']
  #allocation1 [shape = 'u32[144,128]{1,0:T(1,128)}', space=vmem, size = 0x12000, scoped, tag = 'internal scratch']
  %s0 = inlined_call_operand.hbm [shape: bf16[16,1280], index: 0, kind: input, shape index: {}]
  %s1 = inlined_call_operand.hbm [shape: bf16[1280,512], index: 1, kind: input, shape index: {}]
  %s2 = inlined_call_operand.hbm [shape: f32[1,512], index: 2, kind: input, shape index: {}]
  %s3 = inlined_call_operand.hbm [shape: bf16[512,256], index: 3, kind: input, shape index: {}]
  %s4 = inlined_call_operand.hbm [shape: f32[1,256], index: 4, kind: input, shape index: {}]
  %s5 = inlined_call_operand.hbm [shape: bf16[256,128], index: 5, kind: input, shape index: {}]
  %s6 = inlined_call_operand.hbm [shape: f32[1,128], index: 6, kind: input, shape index: {}]
  %s7 = inlined_call_operand.hbm [shape: f32[16,128], index: 7, kind: output, shape index: {}]
  %s8 = sld [smem:[#allocation0]]
  $region66: #{tpu_custom_call.1} parent=0
    _
  %s10 = ssub.s32 1, %s8
  %s11 = scalar_select 0, %s10, %s8
  $region1: #{tpu_custom_call.1} parent=0
    #allocation2 [shape = 'u8[40960]{0}', space=vmem, size = 0xa000, scoped, tag = 'input window, operand 0, single buffered']
    #allocation3 [shape = 's32[1]{0}', space=sflag, size = 0x4, scoped, tag = 'scoped memory for tpu_custom_call.1']
    #allocation4 [shape = 's32[1]{0}', space=sflag, size = 0x4, scoped, tag = 'scoped memory for tpu_custom_call.1']
    #allocation5 [shape = 'u8[1310720]{0}', space=vmem, size = 0x140000, scoped, tag = 'input window, operand 1, single buffered']
    #allocation6 [shape = 's32[1]{0}', space=sflag, size = 0x4, scoped, tag = 'scoped memory for tpu_custom_call.1']
    #allocation7 [shape = 'u8[2048]{0}', space=vmem, size = 0x800, scoped, tag = 'input window, operand 2, single buffered']
    #allocation8 [shape = 'u8[262144]{0}', space=vmem, size = 0x40000, scoped, tag = 'input window, operand 3, single buffered']
    #allocation9 [shape = 's32[1]{0}', space=sflag, size = 0x4, scoped, tag = 'scoped memory for tpu_custom_call.1']
    #allocation10 [shape = 'u8[1024]{0}', space=vmem, size = 0x400, scoped, tag = 'input window, operand 4, single buffered']
    #allocation11 [shape = 'u8[65536]{0}', space=vmem, size = 0x10000, scoped, tag = 'input window, operand 5, single buffered']
    #allocation12 [shape = 's32[1]{0}', space=sflag, size = 0x4, scoped, tag = 'scoped memory for tpu_custom_call.1']
    #allocation13 [shape = 'u8[512]{0}', space=vmem, size = 0x400, scoped, tag = 'input window, operand 6, single buffered']
    #allocation14 [shape = 'u8[8192]{0}', space=vmem, size = 0x2000, scoped, tag = 'output window, operand 0, single buffered']
    %12 = vsyncpa [#allocation3], 0
    %13 = vsyncpa [#allocation6], 0
    %14 = vsyncpa [#allocation9], 0
    %15 = vsyncpa [#allocation12], 0
    %16 = vsyncpa [#allocation4], 0
    // Predicated region
    $region2: #{tpu_custom_call.1} parent=1 // pred_check
      _
    $region3: #{tpu_custom_call.1} parent=1 // pred_check_branch
      %18 = sbr.rel (0) target = $region5
    $region4: #{tpu_custom_call.1} parent=1 // pred_region
      %s20 = ssub.s32 1280, 1280
      %21 = vsyncadd [#allocation3], %s20
      %s22 = sshll.u32 [#allocation2], 4
      %s23 = int_to_ptr.vmem [resolvable:$true] %s22
      %28 = dma.hbm_to_vmem [thread:$0]  %s0, 1280, %s23, [#allocation3], 640, 640, 40
    $region5: #{tpu_custom_call.1} parent=1 // pred_fallthru
      _
    // Predicated region
    $region6: #{tpu_custom_call.1} parent=1 // pred_check
      _
    $region7: #{tpu_custom_call.1} parent=1 // pred_check_branch
      %30 = sbr.rel (0) target = $region9
    $region8: #{tpu_custom_call.1} parent=1 // pred_region
      %s32 = ssub.s32 40960, 40960
      %33 = vsyncadd [#allocation6], %s32
      %s34 = sshll.u32 [#allocation5], 4
      %s35 = int_to_ptr.vmem [resolvable:$true] %s34
      %40 = dma.hbm_to_vmem [thread:$0]  %s1, 40960, %s35, [#allocation6], 256, 256, 16
    $region9: #{tpu_custom_call.1} parent=1 // pred_fallthru
      _
    // Predicated region
    $region10: #{tpu_custom_call.1} parent=1 // pred_check
      _
    $region11: #{tpu_custom_call.1} parent=1 // pred_check_branch
      %42 = sbr.rel (0) target = $region13
    $region12: #{tpu_custom_call.1} parent=1 // pred_region
      %s44 = ssub.s32 64, 64
      %45 = vsyncadd [#allocation6], %s44
      %s47 = sshll.u32 [#allocation7], 4
      %s48 = int_to_ptr.vmem [resolvable:$true] %s47
      %50 = dma.hbm_to_vmem [thread:$0]  %s2, 64, %s48, [#allocation6]
    $region13: #{tpu_custom_call.1} parent=1 // pred_fallthru
      _
    // Predicated region
    $region14: #{tpu_custom_call.1} parent=1 // pred_check
      _
    $region15: #{tpu_custom_call.1} parent=1 // pred_check_branch
      %52 = sbr.rel (0) target = $region17
    $region16: #{tpu_custom_call.1} parent=1 // pred_region
      %s54 = ssub.s32 8192, 8192
      %55 = vsyncadd [#allocation9], %s54
      %s56 = sshll.u32 [#allocation8], 4
      %s57 = int_to_ptr.vmem [resolvable:$true] %s56
      %62 = dma.hbm_to_vmem [thread:$0]  %s3, 8192, %s57, [#allocation9], 128, 128, 8
    $region17: #{tpu_custom_call.1} parent=1 // pred_fallthru
      _
    // Predicated region
    $region18: #{tpu_custom_call.1} parent=1 // pred_check
      _
    $region19: #{tpu_custom_call.1} parent=1 // pred_check_branch
      %64 = sbr.rel (0) target = $region21
    $region20: #{tpu_custom_call.1} parent=1 // pred_region
      %s66 = ssub.s32 32, 32
      %67 = vsyncadd [#allocation9], %s66
      %s69 = sshll.u32 [#allocation10], 4
      %s70 = int_to_ptr.vmem [resolvable:$true] %s69
      %72 = dma.hbm_to_vmem [thread:$0]  %s4, 32, %s70, [#allocation9]
    $region21: #{tpu_custom_call.1} parent=1 // pred_fallthru
      _
    // Predicated region
    $region22: #{tpu_custom_call.1} parent=1 // pred_check
      _
    $region23: #{tpu_custom_call.1} parent=1 // pred_check_branch
      %74 = sbr.rel (0) target = $region25
    $region24: #{tpu_custom_call.1} parent=1 // pred_region
      %s76 = ssub.s32 2048, 2048
      %77 = vsyncadd [#allocation12], %s76
      %s78 = sshll.u32 [#allocation11], 4
      %s79 = int_to_ptr.vmem [resolvable:$true] %s78
      %84 = dma.hbm_to_vmem [thread:$0]  %s5, 2048, %s79, [#allocation12], 64, 64, 4
    $region25: #{tpu_custom_call.1} parent=1 // pred_fallthru
      _
    // Predicated region
    $region26: #{tpu_custom_call.1} parent=1 // pred_check
      _
    $region27: #{tpu_custom_call.1} parent=1 // pred_check_branch
      %86 = sbr.rel (0) target = $region29
    $region28: #{tpu_custom_call.1} parent=1 // pred_region
      %s88 = ssub.s32 16, 16
      %89 = vsyncadd [#allocation12], %s88
      %s91 = sshll.u32 [#allocation13], 4
      %s92 = int_to_ptr.vmem [resolvable:$true] %s91
      %94 = dma.hbm_to_vmem [thread:$0]  %s6, 16, %s92, [#allocation12]
    $region29: #{tpu_custom_call.1} parent=1 // pred_fallthru
      _
    // Predicated region
    $region30: #{tpu_custom_call.1} parent=1 // pred_check
      _
    $region31: #{tpu_custom_call.1} parent=1 // pred_check_branch
      %96 = sbr.rel (0) target = $region33
    $region32: #{tpu_custom_call.1} parent=1 // pred_region
      %97 = dma.done [#allocation3], 1280
    $region33: #{tpu_custom_call.1} parent=1 // pred_fallthru
      _
    // Predicated region
    $region34: #{tpu_custom_call.1} parent=1 // pred_check
      _
    $region35: #{tpu_custom_call.1} parent=1 // pred_check_branch
      %99 = sbr.rel (0) target = $region37
    $region36: #{tpu_custom_call.1} parent=1 // pred_region
      %100 = dma.done [#allocation6], 40960
    $region37: #{tpu_custom_call.1} parent=1 // pred_fallthru
      _
    // Predicated region
    $region38: #{tpu_custom_call.1} parent=1 // pred_check
      _
    $region39: #{tpu_custom_call.1} parent=1 // pred_check_branch
      %102 = sbr.rel (0) target = $region41
    $region40: #{tpu_custom_call.1} parent=1 // pred_region
      %103 = dma.done [#allocation6], 64
    $region41: #{tpu_custom_call.1} parent=1 // pred_fallthru
      _
    // Predicated region
    $region42: #{tpu_custom_call.1} parent=1 // pred_check
      _
    $region43: #{tpu_custom_call.1} parent=1 // pred_check_branch
      %105 = sbr.rel (0) target = $region45
    $region44: #{tpu_custom_call.1} parent=1 // pred_region
      %106 = dma.done [#allocation9], 8192
    $region45: #{tpu_custom_call.1} parent=1 // pred_fallthru
      _
    // Predicated region
    $region46: #{tpu_custom_call.1} parent=1 // pred_check
      _
    $region47: #{tpu_custom_call.1} parent=1 // pred_check_branch
      %108 = sbr.rel (0) target = $region49
    $region48: #{tpu_custom_call.1} parent=1 // pred_region
      %109 = dma.done [#allocation9], 32
    $region49: #{tpu_custom_call.1} parent=1 // pred_fallthru
      _
    // Predicated region
    $region50: #{tpu_custom_call.1} parent=1 // pred_check
      _
    $region51: #{tpu_custom_call.1} parent=1 // pred_check_branch
      %111 = sbr.rel (0) target = $region53
    $region52: #{tpu_custom_call.1} parent=1 // pred_region
      %112 = dma.done [#allocation12], 2048
    $region53: #{tpu_custom_call.1} parent=1 // pred_fallthru
      _
    // Predicated region
    $region54: #{tpu_custom_call.1} parent=1 // pred_check
      _
    $region55: #{tpu_custom_call.1} parent=1 // pred_check_branch
      %114 = sbr.rel (0) target = $region57
    $region56: #{tpu_custom_call.1} parent=1 // pred_region
      %115 = dma.done [#allocation12], 16
    $region57: #{tpu_custom_call.1} parent=1 // pred_fallthru
      _
    %v117 = vld [vmem:[#allocation2] sm:$0xff]
    %v118 = vld [vmem:[#allocation2 + $0x8] sm:$0xff]
    %v119 = vld [vmem:[#allocation2 + $0x10] sm:$0xff]
    %v120 = vld [vmem:[#allocation2 + $0x18] sm:$0xff]
    %v121 = vld [vmem:[#allocation2 + $0x20] sm:$0xff]
    %v122 = vld [vmem:[#allocation2 + $0x28] sm:$0xff]
    %v123 = vld [vmem:[#allocation2 + $0x30] sm:$0xff]
    %v124 = vld [vmem:[#allocation2 + $0x38] sm:$0xff]
    %v125 = vld [vmem:[#allocation2 + $0x40] sm:$0xff]
    %v126 = vld [vmem:[#allocation2 + $0x48] sm:$0xff]
    %v127 = vld [vmem:[#allocation5] sm:$0xff]
    %v128 = vld [vmem:[#allocation5 + $0x8] sm:$0xff]
    %v129 = vld [vmem:[#allocation5 + $0x10] sm:$0xff]
    %v130 = vld [vmem:[#allocation5 + $0x18] sm:$0xff]
    %v131 = vld [vmem:[#allocation5 + $0x20] sm:$0xff]
    %v132 = vld [vmem:[#allocation5 + $0x28] sm:$0xff]
    %v133 = vld [vmem:[#allocation5 + $0x30] sm:$0xff]
    %v134 = vld [vmem:[#allocation5 + $0x38] sm:$0xff]
    %v135 = vld [vmem:[#allocation5 + $0x40] sm:$0xff]
    %v136 = vld [vmem:[#allocation5 + $0x48] sm:$0xff]
    %v137 = vld [vmem:[#allocation5 + $0x50] sm:$0xff]
    %v138 = vld [vmem:[#allocation5 + $0x58] sm:$0xff]
    %v139 = vld [vmem:[#allocation5 + $0x60] sm:$0xff]
    %v140 = vld [vmem:[#allocation5 + $0x68] sm:$0xff]
    %v141 = vld [vmem:[#allocation5 + $0x70] sm:$0xff]
    %v142 = vld [vmem:[#allocation5 + $0x78] sm:$0xff]
    %v143 = vld [vmem:[#allocation5 + $0x80] sm:$0xff]
    %v144 = vld [vmem:[#allocation5 + $0x88] sm:$0xff]
    %v145 = vld [vmem:[#allocation5 + $0x90] sm:$0xff]
    %v146 = vld [vmem:[#allocation5 + $0x98] sm:$0xff]
    %v147 = vld [vmem:[#allocation5 + $0xa0] sm:$0xff]
    %v148 = vld [vmem:[#allocation5 + $0xa8] sm:$0xff]
    %v149 = vld [vmem:[#allocation5 + $0xb0] sm:$0xff]
    %v150 = vld [vmem:[#allocation5 + $0xb8] sm:$0xff]
    %v151 = vld [vmem:[#allocation5 + $0xc0] sm:$0xff]
    %v152 = vld [vmem:[#allocation5 + $0xc8] sm:$0xff]
    %v153 = vld [vmem:[#allocation5 + $0xd0] sm:$0xff]
    %v154 = vld [vmem:[#allocation5 + $0xd8] sm:$0xff]
    %v155 = vld [vmem:[#allocation5 + $0xe0] sm:$0xff]
    %v156 = vld [vmem:[#allocation5 + $0xe8] sm:$0xff]
    %v157 = vld [vmem:[#allocation5 + $0xf0] sm:$0xff]
    %v158 = vld [vmem:[#allocation5 + $0xf8] sm:$0xff]
    %v159 = vld [vmem:[#allocation5 + $0x100] sm:$0xff]
    %v160 = vld [vmem:[#allocation5 + $0x108] sm:$0xff]
    %v161 = vld [vmem:[#allocation5 + $0x110] sm:$0xff]
    %v162 = vld [vmem:[#allocation5 + $0x118] sm:$0xff]
    %v163 = vld [vmem:[#allocation5 + $0x120] sm:$0xff]
    %v164 = vld [vmem:[#allocation5 + $0x128] sm:$0xff]
    %v165 = vld [vmem:[#allocation5 + $0x130] sm:$0xff]
    %v166 = vld [vmem:[#allocation5 + $0x138] sm:$0xff]
    %v167 = vld [vmem:[#allocation5 + $0x140] sm:$0xff]
    %v168 = vld [vmem:[#allocation5 + $0x148] sm:$0xff]
    %v169 = vld [vmem:[#allocation5 + $0x150] sm:$0xff]
    %v170 = vld [vmem:[#allocation5 + $0x158] sm:$0xff]
    %v171 = vld [vmem:[#allocation5 + $0x160] sm:$0xff]
    %v172 = vld [vmem:[#allocation5 + $0x168] sm:$0xff]
    %v173 = vld [vmem:[#allocation5 + $0x170] sm:$0xff]
    %v174 = vld [vmem:[#allocation5 + $0x178] sm:$0xff]
    %v175 = vld [vmem:[#allocation5 + $0x180] sm:$0xff]
    %v176 = vld [vmem:[#allocation5 + $0x188] sm:$0xff]
    %v177 = vld [vmem:[#allocation5 + $0x190] sm:$0xff]
    %v178 = vld [vmem:[#allocation5 + $0x198] sm:$0xff]
    %v179 = vld [vmem:[#allocation5 + $0x1a0] sm:$0xff]
    %v180 = vld [vmem:[#allocation5 + $0x1a8] sm:$0xff]
    %v181 = vld [vmem:[#allocation5 + $0x1b0] sm:$0xff]
    %v182 = vld [vmem:[#allocation5 + $0x1b8] sm:$0xff]
    %v183 = vld [vmem:[#allocation5 + $0x1c0] sm:$0xff]
    %v184 = vld [vmem:[#allocation5 + $0x1c8] sm:$0xff]
    %v185 = vld [vmem:[#allocation5 + $0x1d0] sm:$0xff]
    %v186 = vld [vmem:[#allocation5 + $0x1d8] sm:$0xff]
    %v187 = vld [vmem:[#allocation5 + $0x1e0] sm:$0xff]
    %v188 = vld [vmem:[#allocation5 + $0x1e8] sm:$0xff]
    %v189 = vld [vmem:[#allocation5 + $0x1f0] sm:$0xff]
    %v190 = vld [vmem:[#allocation5 + $0x1f8] sm:$0xff]
    %v191 = vld [vmem:[#allocation5 + $0x200] sm:$0xff]
    %v192 = vld [vmem:[#allocation5 + $0x208] sm:$0xff]
    %v193 = vld [vmem:[#allocation5 + $0x210] sm:$0xff]
    %v194 = vld [vmem:[#allocation5 + $0x218] sm:$0xff]
    %v195 = vld [vmem:[#allocation5 + $0x220] sm:$0xff]
    %v196 = vld [vmem:[#allocation5 + $0x228] sm:$0xff]
    %v197 = vld [vmem:[#allocation5 + $0x230] sm:$0xff]
    %v198 = vld [vmem:[#allocation5 + $0x238] sm:$0xff]
    %v199 = vld [vmem:[#allocation5 + $0x240] sm:$0xff]
    %v200 = vld [vmem:[#allocation5 + $0x248] sm:$0xff]
    %v201 = vld [vmem:[#allocation5 + $0x250] sm:$0xff]
    %v202 = vld [vmem:[#allocation5 + $0x258] sm:$0xff]
    %v203 = vld [vmem:[#allocation5 + $0x260] sm:$0xff]
    %v204 = vld [vmem:[#allocation5 + $0x268] sm:$0xff]
    %v205 = vld [vmem:[#allocation5 + $0x270] sm:$0xff]
    %v206 = vld [vmem:[#allocation5 + $0x278] sm:$0xff]
    %v207 = vld [vmem:[#allocation5 + $0x280] sm:$0xff]
    %v208 = vld [vmem:[#allocation5 + $0x288] sm:$0xff]
    %v209 = vld [vmem:[#allocation5 + $0x290] sm:$0xff]
    %v210 = vld [vmem:[#allocation5 + $0x298] sm:$0xff]
    %v211 = vld [vmem:[#allocation5 + $0x2a0] sm:$0xff]
    %v212 = vld [vmem:[#allocation5 + $0x2a8] sm:$0xff]
    %v213 = vld [vmem:[#allocation5 + $0x2b0] sm:$0xff]
    %v214 = vld [vmem:[#allocation5 + $0x2b8] sm:$0xff]
    %v215 = vld [vmem:[#allocation5 + $0x2c0] sm:$0xff]
    %v216 = vld [vmem:[#allocation5 + $0x2c8] sm:$0xff]
    %v217 = vld [vmem:[#allocation5 + $0x2d0] sm:$0xff]
    %v218 = vld [vmem:[#allocation5 + $0x2d8] sm:$0xff]
    %v219 = vld [vmem:[#allocation5 + $0x2e0] sm:$0xff]
    %v220 = vld [vmem:[#allocation5 + $0x2e8] sm:$0xff]
    %v221 = vld [vmem:[#allocation5 + $0x2f0] sm:$0xff]
    %v222 = vld [vmem:[#allocation5 + $0x2f8] sm:$0xff]
    %v223 = vld [vmem:[#allocation5 + $0x300] sm:$0xff]
    %v224 = vld [vmem:[#allocation5 + $0x308] sm:$0xff]
    %v225 = vld [vmem:[#allocation5 + $0x310] sm:$0xff]
    %v226 = vld [vmem:[#allocation5 + $0x318] sm:$0xff]
    %v227 = vld [vmem:[#allocation5 + $0x320] sm:$0xff]
    %v228 = vld [vmem:[#allocation5 + $0x328] sm:$0xff]
    %v229 = vld [vmem:[#allocation5 + $0x330] sm:$0xff]
    %v230 = vld [vmem:[#allocation5 + $0x338] sm:$0xff]
    %v231 = vld [vmem:[#allocation5 + $0x340] sm:$0xff]
    %v232 = vld [vmem:[#allocation5 + $0x348] sm:$0xff]
    %v233 = vld [vmem:[#allocation5 + $0x350] sm:$0xff]
    %v234 = vld [vmem:[#allocation5 + $0x358] sm:$0xff]
    %v235 = vld [vmem:[#allocation5 + $0x360] sm:$0xff]
    %v236 = vld [vmem:[#allocation5 + $0x368] sm:$0xff]
    %v237 = vld [vmem:[#allocation5 + $0x370] sm:$0xff]
    %v238 = vld [vmem:[#allocation5 + $0x378] sm:$0xff]
    %v239 = vld [vmem:[#allocation5 + $0x380] sm:$0xff]
    %v240 = vld [vmem:[#allocation5 + $0x388] sm:$0xff]
    %v241 = vld [vmem:[#allocation5 + $0x390] sm:$0xff]
    %v242 = vld [vmem:[#allocation5 + $0x398] sm:$0xff]
    %v243 = vld [vmem:[#allocation5 + $0x3a0] sm:$0xff]
    %v244 = vld [vmem:[#allocation5 + $0x3a8] sm:$0xff]
    %v245 = vld [vmem:[#allocation5 + $0x3b0] sm:$0xff]
    %v246 = vld [vmem:[#allocation5 + $0x3b8] sm:$0xff]
    %v247 = vld [vmem:[#allocation5 + $0x3c0] sm:$0xff]
    %v248 = vld [vmem:[#allocation5 + $0x3c8] sm:$0xff]
    %v249 = vld [vmem:[#allocation5 + $0x3d0] sm:$0xff]
    %v250 = vld [vmem:[#allocation5 + $0x3d8] sm:$0xff]
    %v251 = vld [vmem:[#allocation5 + $0x3e0] sm:$0xff]
    %v252 = vld [vmem:[#allocation5 + $0x3e8] sm:$0xff]
    %v253 = vld [vmem:[#allocation5 + $0x3f0] sm:$0xff]
    %v254 = vld [vmem:[#allocation5 + $0x3f8] sm:$0xff]
    %v255 = vld [vmem:[#allocation5 + $0x400] sm:$0xff]
    %v256 = vld [vmem:[#allocation5 + $0x408] sm:$0xff]
    %v257 = vld [vmem:[#allocation5 + $0x410] sm:$0xff]
    %v258 = vld [vmem:[#allocation5 + $0x418] sm:$0xff]
    %v259 = vld [vmem:[#allocation5 + $0x420] sm:$0xff]
    %v260 = vld [vmem:[#allocation5 + $0x428] sm:$0xff]
    %v261 = vld [vmem:[#allocation5 + $0x430] sm:$0xff]
    %v262 = vld [vmem:[#allocation5 + $0x438] sm:$0xff]
    %v263 = vld [vmem:[#allocation5 + $0x440] sm:$0xff]
    %v264 = vld [vmem:[#allocation5 + $0x448] sm:$0xff]
    %v265 = vld [vmem:[#allocation5 + $0x450] sm:$0xff]
    %v266 = vld [vmem:[#allocation5 + $0x458] sm:$0xff]
    %v267 = vld [vmem:[#allocation5 + $0x460] sm:$0xff]
    %v268 = vld [vmem:[#allocation5 + $0x468] sm:$0xff]
    %v269 = vld [vmem:[#allocation5 + $0x470] sm:$0xff]
    %v270 = vld [vmem:[#allocation5 + $0x478] sm:$0xff]
    %v271 = vld [vmem:[#allocation5 + $0x480] sm:$0xff]
    %v272 = vld [vmem:[#allocation5 + $0x488] sm:$0xff]
    %v273 = vld [vmem:[#allocation5 + $0x490] sm:$0xff]
    %v274 = vld [vmem:[#allocation5 + $0x498] sm:$0xff]
    %v275 = vld [vmem:[#allocation5 + $0x4a0] sm:$0xff]
    %v276 = vld [vmem:[#allocation5 + $0x4a8] sm:$0xff]
    %v277 = vld [vmem:[#allocation5 + $0x4b0] sm:$0xff]
    %v278 = vld [vmem:[#allocation5 + $0x4b8] sm:$0xff]
    %v279 = vld [vmem:[#allocation5 + $0x4c0] sm:$0xff]
    %v280 = vld [vmem:[#allocation5 + $0x4c8] sm:$0xff]
    %v281 = vld [vmem:[#allocation5 + $0x4d0] sm:$0xff]
    %v282 = vld [vmem:[#allocation5 + $0x4d8] sm:$0xff]
    %v283 = vld [vmem:[#allocation5 + $0x4e0] sm:$0xff]
    %v284 = vld [vmem:[#allocation5 + $0x4e8] sm:$0xff]
    %v285 = vld [vmem:[#allocation5 + $0x4f0] sm:$0xff]
    %v286 = vld [vmem:[#allocation5 + $0x4f8] sm:$0xff]
    %v287 = vld [vmem:[#allocation5 + $0x500] sm:$0xff]
    %v288 = vld [vmem:[#allocation5 + $0x508] sm:$0xff]
    %v289 = vld [vmem:[#allocation5 + $0x510] sm:$0xff]
    %v290 = vld [vmem:[#allocation5 + $0x518] sm:$0xff]
    %v291 = vld [vmem:[#allocation5 + $0x520] sm:$0xff]
    %v292 = vld [vmem:[#allocation5 + $0x528] sm:$0xff]
    %v293 = vld [vmem:[#allocation5 + $0x530] sm:$0xff]
    %v294 = vld [vmem:[#allocation5 + $0x538] sm:$0xff]
    %v295 = vld [vmem:[#allocation5 + $0x540] sm:$0xff]
    %v296 = vld [vmem:[#allocation5 + $0x548] sm:$0xff]
    %v297 = vld [vmem:[#allocation5 + $0x550] sm:$0xff]
    %v298 = vld [vmem:[#allocation5 + $0x558] sm:$0xff]
    %v299 = vld [vmem:[#allocation5 + $0x560] sm:$0xff]
    %v300 = vld [vmem:[#allocation5 + $0x568] sm:$0xff]
    %v301 = vld [vmem:[#allocation5 + $0x570] sm:$0xff]
    %v302 = vld [vmem:[#allocation5 + $0x578] sm:$0xff]
    %v303 = vld [vmem:[#allocation5 + $0x580] sm:$0xff]
    %v304 = vld [vmem:[#allocation5 + $0x588] sm:$0xff]
    %v305 = vld [vmem:[#allocation5 + $0x590] sm:$0xff]
    %v306 = vld [vmem:[#allocation5 + $0x598] sm:$0xff]
    %v307 = vld [vmem:[#allocation5 + $0x5a0] sm:$0xff]
    %v308 = vld [vmem:[#allocation5 + $0x5a8] sm:$0xff]
    %v309 = vld [vmem:[#allocation5 + $0x5b0] sm:$0xff]
    %v310 = vld [vmem:[#allocation5 + $0x5b8] sm:$0xff]
    %v311 = vld [vmem:[#allocation5 + $0x5c0] sm:$0xff]
    %v312 = vld [vmem:[#allocation5 + $0x5c8] sm:$0xff]
    %v313 = vld [vmem:[#allocation5 + $0x5d0] sm:$0xff]
    %v314 = vld [vmem:[#allocation5 + $0x5d8] sm:$0xff]
    %v315 = vld [vmem:[#allocation5 + $0x5e0] sm:$0xff]
    %v316 = vld [vmem:[#allocation5 + $0x5e8] sm:$0xff]
    %v317 = vld [vmem:[#allocation5 + $0x5f0] sm:$0xff]
    %v318 = vld [vmem:[#allocation5 + $0x5f8] sm:$0xff]
    %v319 = vld [vmem:[#allocation5 + $0x600] sm:$0xff]
    %v320 = vld [vmem:[#allocation5 + $0x608] sm:$0xff]
    %v321 = vld [vmem:[#allocation5 + $0x610] sm:$0xff]
    %v322 = vld [vmem:[#allocation5 + $0x618] sm:$0xff]
    %v323 = vld [vmem:[#allocation5 + $0x620] sm:$0xff]
    %v324 = vld [vmem:[#allocation5 + $0x628] sm:$0xff]
    %v325 = vld [vmem:[#allocation5 + $0x630] sm:$0xff]
    %v326 = vld [vmem:[#allocation5 + $0x638] sm:$0xff]
    %v327 = vld [vmem:[#allocation5 + $0x640] sm:$0xff]
    %v328 = vld [vmem:[#allocation5 + $0x648] sm:$0xff]
    %v329 = vld [vmem:[#allocation5 + $0x650] sm:$0xff]
    %v330 = vld [vmem:[#allocation5 + $0x658] sm:$0xff]
    %v331 = vld [vmem:[#allocation5 + $0x660] sm:$0xff]
    %v332 = vld [vmem:[#allocation5 + $0x668] sm:$0xff]
    %v333 = vld [vmem:[#allocation5 + $0x670] sm:$0xff]
    %v334 = vld [vmem:[#allocation5 + $0x678] sm:$0xff]
    %v335 = vld [vmem:[#allocation5 + $0x680] sm:$0xff]
    %v336 = vld [vmem:[#allocation5 + $0x688] sm:$0xff]
    %v337 = vld [vmem:[#allocation5 + $0x690] sm:$0xff]
    %v338 = vld [vmem:[#allocation5 + $0x698] sm:$0xff]
    %v339 = vld [vmem:[#allocation5 + $0x6a0] sm:$0xff]
    %v340 = vld [vmem:[#allocation5 + $0x6a8] sm:$0xff]
    %v341 = vld [vmem:[#allocation5 + $0x6b0] sm:$0xff]
    %v342 = vld [vmem:[#allocation5 + $0x6b8] sm:$0xff]
    %v343 = vld [vmem:[#allocation5 + $0x6c0] sm:$0xff]
    %v344 = vld [vmem:[#allocation5 + $0x6c8] sm:$0xff]
    %v345 = vld [vmem:[#allocation5 + $0x6d0] sm:$0xff]
    %v346 = vld [vmem:[#allocation5 + $0x6d8] sm:$0xff]
    %v347 = vld [vmem:[#allocation5 + $0x6e0] sm:$0xff]
    %v348 = vld [vmem:[#allocation5 + $0x6e8] sm:$0xff]
    %v349 = vld [vmem:[#allocation5 + $0x6f0] sm:$0xff]
    %v350 = vld [vmem:[#allocation5 + $0x6f8] sm:$0xff]
    %v351 = vld [vmem:[#allocation5 + $0x700] sm:$0xff]
    %v352 = vld [vmem:[#allocation5 + $0x708] sm:$0xff]
    %v353 = vld [vmem:[#allocation5 + $0x710] sm:$0xff]
    %v354 = vld [vmem:[#allocation5 + $0x718] sm:$0xff]
    %v355 = vld [vmem:[#allocation5 + $0x720] sm:$0xff]
    %v356 = vld [vmem:[#allocation5 + $0x728] sm:$0xff]
    %v357 = vld [vmem:[#allocation5 + $0x730] sm:$0xff]
    %v358 = vld [vmem:[#allocation5 + $0x738] sm:$0xff]
    %v359 = vld [vmem:[#allocation5 + $0x740] sm:$0xff]
    %v360 = vld [vmem:[#allocation5 + $0x748] sm:$0xff]
    %v361 = vld [vmem:[#allocation5 + $0x750] sm:$0xff]
    %v362 = vld [vmem:[#allocation5 + $0x758] sm:$0xff]
    %v363 = vld [vmem:[#allocation5 + $0x760] sm:$0xff]
    %v364 = vld [vmem:[#allocation5 + $0x768] sm:$0xff]
    %v365 = vld [vmem:[#allocation5 + $0x770] sm:$0xff]
    %v366 = vld [vmem:[#allocation5 + $0x778] sm:$0xff]
    %v367 = vld [vmem:[#allocation5 + $0x780] sm:$0xff]
    %v368 = vld [vmem:[#allocation5 + $0x788] sm:$0xff]
    %v369 = vld [vmem:[#allocation5 + $0x790] sm:$0xff]
    %v370 = vld [vmem:[#allocation5 + $0x798] sm:$0xff]
    %v371 = vld [vmem:[#allocation5 + $0x7a0] sm:$0xff]
    %v372 = vld [vmem:[#allocation5 + $0x7a8] sm:$0xff]
    %v373 = vld [vmem:[#allocation5 + $0x7b0] sm:$0xff]
    %v374 = vld [vmem:[#allocation5 + $0x7b8] sm:$0xff]
    %v375 = vld [vmem:[#allocation5 + $0x7c0] sm:$0xff]
    %v376 = vld [vmem:[#allocation5 + $0x7c8] sm:$0xff]
    %v377 = vld [vmem:[#allocation5 + $0x7d0] sm:$0xff]
    %v378 = vld [vmem:[#allocation5 + $0x7d8] sm:$0xff]
    %v379 = vld [vmem:[#allocation5 + $0x7e0] sm:$0xff]
    %v380 = vld [vmem:[#allocation5 + $0x7e8] sm:$0xff]
    %v381 = vld [vmem:[#allocation5 + $0x7f0] sm:$0xff]
    %v382 = vld [vmem:[#allocation5 + $0x7f8] sm:$0xff]
    %v383 = vld [vmem:[#allocation5 + $0x800] sm:$0xff]
    %v384 = vld [vmem:[#allocation5 + $0x808] sm:$0xff]
    %v385 = vld [vmem:[#allocation5 + $0x810] sm:$0xff]
    %v386 = vld [vmem:[#allocation5 + $0x818] sm:$0xff]
    %v387 = vld [vmem:[#allocation5 + $0x820] sm:$0xff]
    %v388 = vld [vmem:[#allocation5 + $0x828] sm:$0xff]
    %v389 = vld [vmem:[#allocation5 + $0x830] sm:$0xff]
    %v390 = vld [vmem:[#allocation5 + $0x838] sm:$0xff]
    %v391 = vld [vmem:[#allocation5 + $0x840] sm:$0xff]
    %v392 = vld [vmem:[#allocation5 + $0x848] sm:$0xff]
    %v393 = vld [vmem:[#allocation5 + $0x850] sm:$0xff]
    %v394 = vld [vmem:[#allocation5 + $0x858] sm:$0xff]
    %v395 = vld [vmem:[#allocation5 + $0x860] sm:$0xff]
    %v396 = vld [vmem:[#allocation5 + $0x868] sm:$0xff]
    %v397 = vld [vmem:[#allocation5 + $0x870] sm:$0xff]
    %v398 = vld [vmem:[#allocation5 + $0x878] sm:$0xff]
    %v399 = vld [vmem:[#allocation5 + $0x880] sm:$0xff]
    %v400 = vld [vmem:[#allocation5 + $0x888] sm:$0xff]
    %v401 = vld [vmem:[#allocation5 + $0x890] sm:$0xff]
    %v402 = vld [vmem:[#allocation5 + $0x898] sm:$0xff]
    %v403 = vld [vmem:[#allocation5 + $0x8a0] sm:$0xff]
    %v404 = vld [vmem:[#allocation5 + $0x8a8] sm:$0xff]
    %v405 = vld [vmem:[#allocation5 + $0x8b0] sm:$0xff]
    %v406 = vld [vmem:[#allocation5 + $0x8b8] sm:$0xff]
    %v407 = vld [vmem:[#allocation5 + $0x8c0] sm:$0xff]
    %v408 = vld [vmem:[#allocation5 + $0x8c8] sm:$0xff]
    %v409 = vld [vmem:[#allocation5 + $0x8d0] sm:$0xff]
    %v410 = vld [vmem:[#allocation5 + $0x8d8] sm:$0xff]
    %v411 = vld [vmem:[#allocation5 + $0x8e0] sm:$0xff]
    %v412 = vld [vmem:[#allocation5 + $0x8e8] sm:$0xff]
    %v413 = vld [vmem:[#allocation5 + $0x8f0] sm:$0xff]
    %v414 = vld [vmem:[#allocation5 + $0x8f8] sm:$0xff]
    %v415 = vld [vmem:[#allocation5 + $0x900] sm:$0xff]
    %v416 = vld [vmem:[#allocation5 + $0x908] sm:$0xff]
    %v417 = vld [vmem:[#allocation5 + $0x910] sm:$0xff]
    %v418 = vld [vmem:[#allocation5 + $0x918] sm:$0xff]
    %v419 = vld [vmem:[#allocation5 + $0x920] sm:$0xff]
    %v420 = vld [vmem:[#allocation5 + $0x928] sm:$0xff]
    %v421 = vld [vmem:[#allocation5 + $0x930] sm:$0xff]
    %v422 = vld [vmem:[#allocation5 + $0x938] sm:$0xff]
    %v423 = vld [vmem:[#allocation5 + $0x940] sm:$0xff]
    %v424 = vld [vmem:[#allocation5 + $0x948] sm:$0xff]
    %v425 = vld [vmem:[#allocation5 + $0x950] sm:$0xff]
    %v426 = vld [vmem:[#allocation5 + $0x958] sm:$0xff]
    %v427 = vld [vmem:[#allocation5 + $0x960] sm:$0xff]
    %v428 = vld [vmem:[#allocation5 + $0x968] sm:$0xff]
    %v429 = vld [vmem:[#allocation5 + $0x970] sm:$0xff]
    %v430 = vld [vmem:[#allocation5 + $0x978] sm:$0xff]
    %v431 = vld [vmem:[#allocation5 + $0x980] sm:$0xff]
    %v432 = vld [vmem:[#allocation5 + $0x988] sm:$0xff]
    %v433 = vld [vmem:[#allocation5 + $0x990] sm:$0xff]
    %v434 = vld [vmem:[#allocation5 + $0x998] sm:$0xff]
    %v435 = vld [vmem:[#allocation5 + $0x9a0] sm:$0xff]
    %v436 = vld [vmem:[#allocation5 + $0x9a8] sm:$0xff]
    %v437 = vld [vmem:[#allocation5 + $0x9b0] sm:$0xff]
    %v438 = vld [vmem:[#allocation5 + $0x9b8] sm:$0xff]
    %v439 = vld [vmem:[#allocation5 + $0x9c0] sm:$0xff]
    %v440 = vld [vmem:[#allocation5 + $0x9c8] sm:$0xff]
    %v441 = vld [vmem:[#allocation5 + $0x9d0] sm:$0xff]
    %v442 = vld [vmem:[#allocation5 + $0x9d8] sm:$0xff]
    %v443 = vld [vmem:[#allocation5 + $0x9e0] sm:$0xff]
    %v444 = vld [vmem:[#allocation5 + $0x9e8] sm:$0xff]
    %v445 = vld [vmem:[#allocation5 + $0x9f0] sm:$0xff]
    %v446 = vld [vmem:[#allocation5 + $0x9f8] sm:$0xff]
    %v447 = vld [vmem:[#allocation7] sm:$0xf]
    %v449 = vlaneseq
    %v450 = vshrl.u32 %v449, 7
    %v451 = vsub.s32 0, %v450
    %v452 = vrot.slane %v447, %v451
    %v453 = vlaneseq
    %v454 = vshrl.u32 %v453, 7
    %v455 = vsub.s32 1, %v454
    %v456 = vrot.slane %v447, %v455
    %v457 = vlaneseq
    %v458 = vshrl.u32 %v457, 7
    %v459 = vsub.s32 2, %v458
    %v460 = vrot.slane %v447, %v459
    %v461 = vlaneseq
    %v462 = vshrl.u32 %v461, 7
    %v463 = vsub.s32 3, %v462
    %v464 = vrot.slane %v447, %v463
    %v479 = vunpack.c.l.b16 %v117
    %v480 = vunpack.c.h.b16 %v117
    %v481 = vunpack.c.l.b16 %v118
    %v482 = vunpack.c.h.b16 %v118
    %v483 = vunpack.c.l.b16 %v119
    %v484 = vunpack.c.h.b16 %v119
    %v485 = vunpack.c.l.b16 %v120
    %v486 = vunpack.c.h.b16 %v120
    %v487 = vunpack.c.l.b16 %v121
    %v488 = vunpack.c.h.b16 %v121
    %v489 = vunpack.c.l.b16 %v122
    %v490 = vunpack.c.h.b16 %v122
    %v491 = vunpack.c.l.b16 %v123
    %v492 = vunpack.c.h.b16 %v123
    %v493 = vunpack.c.l.b16 %v124
    %v494 = vunpack.c.h.b16 %v124
    %v495 = vunpack.c.l.b16 %v125
    %v496 = vunpack.c.h.b16 %v125
    %v497 = vunpack.c.l.b16 %v126
    %v498 = vunpack.c.h.b16 %v126
    %v499 = vpack.c.b16 %v489, %v479
    %v500 = vpack.c.b16 %v490, %v480
    %v501 = vpack.c.b16 %v491, %v481
    %v502 = vpack.c.b16 %v492, %v482
    %v503 = vpack.c.b16 %v493, %v483
    %v504 = vpack.c.b16 %v494, %v484
    %v505 = vpack.c.b16 %v495, %v485
    %v506 = vpack.c.b16 %v496, %v486
    %v507 = vpack.c.b16 %v497, %v487
    %v508 = vpack.c.b16 %v498, %v488
    %v839 = vunpack.c.l.b16 %v127
    %v840 = vunpack.c.h.b16 %v127
    %v841 = vunpack.c.l.b16 %v128
    %v842 = vunpack.c.h.b16 %v128
    %v843 = vunpack.c.l.b16 %v129
    %v844 = vunpack.c.h.b16 %v129
    %v845 = vunpack.c.l.b16 %v130
    %v846 = vunpack.c.h.b16 %v130
    %v847 = vunpack.c.l.b16 %v131
    %v848 = vunpack.c.h.b16 %v131
    %v849 = vunpack.c.l.b16 %v132
    %v850 = vunpack.c.h.b16 %v132
    %v851 = vunpack.c.l.b16 %v133
    %v852 = vunpack.c.h.b16 %v133
    %v853 = vunpack.c.l.b16 %v134
    %v854 = vunpack.c.h.b16 %v134
    %v855 = vunpack.c.l.b16 %v135
    %v856 = vunpack.c.h.b16 %v135
    %v857 = vunpack.c.l.b16 %v136
    %v858 = vunpack.c.h.b16 %v136
    %v859 = vunpack.c.l.b16 %v137
    %v860 = vunpack.c.h.b16 %v137
    %v861 = vunpack.c.l.b16 %v138
    %v862 = vunpack.c.h.b16 %v138
    %v863 = vunpack.c.l.b16 %v139
    %v864 = vunpack.c.h.b16 %v139
    %v865 = vunpack.c.l.b16 %v140
    %v866 = vunpack.c.h.b16 %v140
    %v867 = vunpack.c.l.b16 %v141
    %v868 = vunpack.c.h.b16 %v141
    %v869 = vunpack.c.l.b16 %v142
    %v870 = vunpack.c.h.b16 %v142
    %v871 = vunpack.c.l.b16 %v143
    %v872 = vunpack.c.h.b16 %v143
    %v873 = vunpack.c.l.b16 %v144
    %v874 = vunpack.c.h.b16 %v144
    %v875 = vunpack.c.l.b16 %v145
    %v876 = vunpack.c.h.b16 %v145
    %v877 = vunpack.c.l.b16 %v146
    %v878 = vunpack.c.h.b16 %v146
    %v879 = vunpack.c.l.b16 %v147
    %v880 = vunpack.c.h.b16 %v147
    %v881 = vunpack.c.l.b16 %v148
    %v882 = vunpack.c.h.b16 %v148
    %v883 = vunpack.c.l.b16 %v149
    %v884 = vunpack.c.h.b16 %v149
    %v885 = vunpack.c.l.b16 %v150
    %v886 = vunpack.c.h.b16 %v150
    %v887 = vunpack.c.l.b16 %v151
    %v888 = vunpack.c.h.b16 %v151
    %v889 = vunpack.c.l.b16 %v152
    %v890 = vunpack.c.h.b16 %v152
    %v891 = vunpack.c.l.b16 %v153
    %v892 = vunpack.c.h.b16 %v153
    %v893 = vunpack.c.l.b16 %v154
    %v894 = vunpack.c.h.b16 %v154
    %v895 = vunpack.c.l.b16 %v155
    %v896 = vunpack.c.h.b16 %v155
    %v897 = vunpack.c.l.b16 %v156
    %v898 = vunpack.c.h.b16 %v156
    %v899 = vunpack.c.l.b16 %v157
    %v900 = vunpack.c.h.b16 %v157
    %v901 = vunpack.c.l.b16 %v158
    %v902 = vunpack.c.h.b16 %v158
    %v903 = vunpack.c.l.b16 %v159
    %v904 = vunpack.c.h.b16 %v159
    %v905 = vunpack.c.l.b16 %v160
    %v906 = vunpack.c.h.b16 %v160
    %v907 = vunpack.c.l.b16 %v161
    %v908 = vunpack.c.h.b16 %v161
    %v909 = vunpack.c.l.b16 %v162
    %v910 = vunpack.c.h.b16 %v162
    %v911 = vunpack.c.l.b16 %v163
    %v912 = vunpack.c.h.b16 %v163
    %v913 = vunpack.c.l.b16 %v164
    %v914 = vunpack.c.h.b16 %v164
    %v915 = vunpack.c.l.b16 %v165
    %v916 = vunpack.c.h.b16 %v165
    %v917 = vunpack.c.l.b16 %v166
    %v918 = vunpack.c.h.b16 %v166
    %v919 = vunpack.c.l.b16 %v167
    %v920 = vunpack.c.h.b16 %v167
    %v921 = vunpack.c.l.b16 %v168
    %v922 = vunpack.c.h.b16 %v168
    %v923 = vunpack.c.l.b16 %v169
    %v924 = vunpack.c.h.b16 %v169
    %v925 = vunpack.c.l.b16 %v170
    %v926 = vunpack.c.h.b16 %v170
    %v927 = vunpack.c.l.b16 %v171
    %v928 = vunpack.c.h.b16 %v171
    %v929 = vunpack.c.l.b16 %v172
    %v930 = vunpack.c.h.b16 %v172
    %v931 = vunpack.c.l.b16 %v173
    %v932 = vunpack.c.h.b16 %v173
    %v933 = vunpack.c.l.b16 %v174
    %v934 = vunpack.c.h.b16 %v174
    %v935 = vunpack.c.l.b16 %v175
    %v936 = vunpack.c.h.b16 %v175
    %v937 = vunpack.c.l.b16 %v176
    %v938 = vunpack.c.h.b16 %v176
    %v939 = vunpack.c.l.b16 %v177
    %v940 = vunpack.c.h.b16 %v177
    %v941 = vunpack.c.l.b16 %v178
    %v942 = vunpack.c.h.b16 %v178
    %v943 = vunpack.c.l.b16 %v179
    %v944 = vunpack.c.h.b16 %v179
    %v945 = vunpack.c.l.b16 %v180
    %v946 = vunpack.c.h.b16 %v180
    %v947 = vunpack.c.l.b16 %v181
    %v948 = vunpack.c.h.b16 %v181
    %v949 = vunpack.c.l.b16 %v182
    %v950 = vunpack.c.h.b16 %v182
    %v951 = vunpack.c.l.b16 %v183
    %v952 = vunpack.c.h.b16 %v183
    %v953 = vunpack.c.l.b16 %v184
    %v954 = vunpack.c.h.b16 %v184
    %v955 = vunpack.c.l.b16 %v185
    %v956 = vunpack.c.h.b16 %v185
    %v957 = vunpack.c.l.b16 %v186
    %v958 = vunpack.c.h.b16 %v186
    %v959 = vunpack.c.l.b16 %v187
    %v960 = vunpack.c.h.b16 %v187
    %v961 = vunpack.c.l.b16 %v188
    %v962 = vunpack.c.h.b16 %v188
    %v963 = vunpack.c.l.b16 %v189
    %v964 = vunpack.c.h.b16 %v189
    %v965 = vunpack.c.l.b16 %v190
    %v966 = vunpack.c.h.b16 %v190
    %v967 = vunpack.c.l.b16 %v191
    %v968 = vunpack.c.h.b16 %v191
    %v969 = vunpack.c.l.b16 %v192
    %v970 = vunpack.c.h.b16 %v192
    %v971 = vunpack.c.l.b16 %v193
    %v972 = vunpack.c.h.b16 %v193
    %v973 = vunpack.c.l.b16 %v194
    %v974 = vunpack.c.h.b16 %v194
    %v975 = vunpack.c.l.b16 %v195
    %v976 = vunpack.c.h.b16 %v195
    %v977 = vunpack.c.l.b16 %v196
    %v978 = vunpack.c.h.b16 %v196
    %v979 = vunpack.c.l.b16 %v197
    %v980 = vunpack.c.h.b16 %v197
    %v981 = vunpack.c.l.b16 %v198
    %v982 = vunpack.c.h.b16 %v198
    %v983 = vunpack.c.l.b16 %v199
    %v984 = vunpack.c.h.b16 %v199
    %v985 = vunpack.c.l.b16 %v200
    %v986 = vunpack.c.h.b16 %v200
    %v987 = vunpack.c.l.b16 %v201
    %v988 = vunpack.c.h.b16 %v201
    %v989 = vunpack.c.l.b16 %v202
    %v990 = vunpack.c.h.b16 %v202
    %v991 = vunpack.c.l.b16 %v203
    %v992 = vunpack.c.h.b16 %v203
    %v993 = vunpack.c.l.b16 %v204
    %v994 = vunpack.c.h.b16 %v204
    %v995 = vunpack.c.l.b16 %v205
    %v996 = vunpack.c.h.b16 %v205
    %v997 = vunpack.c.l.b16 %v206
    %v998 = vunpack.c.h.b16 %v206
    %v999 = vunpack.c.l.b16 %v207
    %v1000 = vunpack.c.h.b16 %v207
    %v1001 = vunpack.c.l.b16 %v208
    %v1002 = vunpack.c.h.b16 %v208
    %v1003 = vunpack.c.l.b16 %v209
    %v1004 = vunpack.c.h.b16 %v209
    %v1005 = vunpack.c.l.b16 %v210
    %v1006 = vunpack.c.h.b16 %v210
    %v1007 = vunpack.c.l.b16 %v211
    %v1008 = vunpack.c.h.b16 %v211
    %v1009 = vunpack.c.l.b16 %v212
    %v1010 = vunpack.c.h.b16 %v212
    %v1011 = vunpack.c.l.b16 %v213
    %v1012 = vunpack.c.h.b16 %v213
    %v1013 = vunpack.c.l.b16 %v214
    %v1014 = vunpack.c.h.b16 %v214
    %v1015 = vunpack.c.l.b16 %v215
    %v1016 = vunpack.c.h.b16 %v215
    %v1017 = vunpack.c.l.b16 %v216
    %v1018 = vunpack.c.h.b16 %v216
    %v1019 = vunpack.c.l.b16 %v217
    %v1020 = vunpack.c.h.b16 %v217
    %v1021 = vunpack.c.l.b16 %v218
    %v1022 = vunpack.c.h.b16 %v218
    %v1023 = vunpack.c.l.b16 %v219
    %v1024 = vunpack.c.h.b16 %v219
    %v1025 = vunpack.c.l.b16 %v220
    %v1026 = vunpack.c.h.b16 %v220
    %v1027 = vunpack.c.l.b16 %v221
    %v1028 = vunpack.c.h.b16 %v221
    %v1029 = vunpack.c.l.b16 %v222
    %v1030 = vunpack.c.h.b16 %v222
    %v1031 = vunpack.c.l.b16 %v223
    %v1032 = vunpack.c.h.b16 %v223
    %v1033 = vunpack.c.l.b16 %v224
    %v1034 = vunpack.c.h.b16 %v224
    %v1035 = vunpack.c.l.b16 %v225
    %v1036 = vunpack.c.h.b16 %v225
    %v1037 = vunpack.c.l.b16 %v226
    %v1038 = vunpack.c.h.b16 %v226
    %v1039 = vunpack.c.l.b16 %v227
    %v1040 = vunpack.c.h.b16 %v227
    %v1041 = vunpack.c.l.b16 %v228
    %v1042 = vunpack.c.h.b16 %v228
    %v1043 = vunpack.c.l.b16 %v229
    %v1044 = vunpack.c.h.b16 %v229
    %v1045 = vunpack.c.l.b16 %v230
    %v1046 = vunpack.c.h.b16 %v230
    %v1047 = vunpack.c.l.b16 %v231
    %v1048 = vunpack.c.h.b16 %v231
    %v1049 = vunpack.c.l.b16 %v232
    %v1050 = vunpack.c.h.b16 %v232
    %v1051 = vunpack.c.l.b16 %v233
    %v1052 = vunpack.c.h.b16 %v233
    %v1053 = vunpack.c.l.b16 %v234
    %v1054 = vunpack.c.h.b16 %v234
    %v1055 = vunpack.c.l.b16 %v235
    %v1056 = vunpack.c.h.b16 %v235
    %v1057 = vunpack.c.l.b16 %v236
    %v1058 = vunpack.c.h.b16 %v236
    %v1059 = vunpack.c.l.b16 %v237
    %v1060 = vunpack.c.h.b16 %v237
    %v1061 = vunpack.c.l.b16 %v238
    %v1062 = vunpack.c.h.b16 %v238
    %v1063 = vunpack.c.l.b16 %v239
    %v1064 = vunpack.c.h.b16 %v239
    %v1065 = vunpack.c.l.b16 %v240
    %v1066 = vunpack.c.h.b16 %v240
    %v1067 = vunpack.c.l.b16 %v241
    %v1068 = vunpack.c.h.b16 %v241
    %v1069 = vunpack.c.l.b16 %v242
    %v1070 = vunpack.c.h.b16 %v242
    %v1071 = vunpack.c.l.b16 %v243
    %v1072 = vunpack.c.h.b16 %v243
    %v1073 = vunpack.c.l.b16 %v244
    %v1074 = vunpack.c.h.b16 %v244
    %v1075 = vunpack.c.l.b16 %v245
    %v1076 = vunpack.c.h.b16 %v245
    %v1077 = vunpack.c.l.b16 %v246
    %v1078 = vunpack.c.h.b16 %v246
    %v1079 = vunpack.c.l.b16 %v247
    %v1080 = vunpack.c.h.b16 %v247
    %v1081 = vunpack.c.l.b16 %v248
    %v1082 = vunpack.c.h.b16 %v248
    %v1083 = vunpack.c.l.b16 %v249
    %v1084 = vunpack.c.h.b16 %v249
    %v1085 = vunpack.c.l.b16 %v250
    %v1086 = vunpack.c.h.b16 %v250
    %v1087 = vunpack.c.l.b16 %v251
    %v1088 = vunpack.c.h.b16 %v251
    %v1089 = vunpack.c.l.b16 %v252
    %v1090 = vunpack.c.h.b16 %v252
    %v1091 = vunpack.c.l.b16 %v253
    %v1092 = vunpack.c.h.b16 %v253
    %v1093 = vunpack.c.l.b16 %v254
    %v1094 = vunpack.c.h.b16 %v254
    %v1095 = vunpack.c.l.b16 %v255
    %v1096 = vunpack.c.h.b16 %v255
    %v1097 = vunpack.c.l.b16 %v256
    %v1098 = vunpack.c.h.b16 %v256
    %v1099 = vunpack.c.l.b16 %v257
    %v1100 = vunpack.c.h.b16 %v257
    %v1101 = vunpack.c.l.b16 %v258
    %v1102 = vunpack.c.h.b16 %v258
    %v1103 = vunpack.c.l.b16 %v259
    %v1104 = vunpack.c.h.b16 %v259
    %v1105 = vunpack.c.l.b16 %v260
    %v1106 = vunpack.c.h.b16 %v260
    %v1107 = vunpack.c.l.b16 %v261
    %v1108 = vunpack.c.h.b16 %v261
    %v1109 = vunpack.c.l.b16 %v262
    %v1110 = vunpack.c.h.b16 %v262
    %v1111 = vunpack.c.l.b16 %v263
    %v1112 = vunpack.c.h.b16 %v263
    %v1113 = vunpack.c.l.b16 %v264
    %v1114 = vunpack.c.h.b16 %v264
    %v1115 = vunpack.c.l.b16 %v265
    %v1116 = vunpack.c.h.b16 %v265
    %v1117 = vunpack.c.l.b16 %v266
    %v1118 = vunpack.c.h.b16 %v266
    %v1119 = vunpack.c.l.b16 %v267
    %v1120 = vunpack.c.h.b16 %v267
    %v1121 = vunpack.c.l.b16 %v268
    %v1122 = vunpack.c.h.b16 %v268
    %v1123 = vunpack.c.l.b16 %v269
    %v1124 = vunpack.c.h.b16 %v269
    %v1125 = vunpack.c.l.b16 %v270
    %v1126 = vunpack.c.h.b16 %v270
    %v1127 = vunpack.c.l.b16 %v271
    %v1128 = vunpack.c.h.b16 %v271
    %v1129 = vunpack.c.l.b16 %v272
    %v1130 = vunpack.c.h.b16 %v272
    %v1131 = vunpack.c.l.b16 %v273
    %v1132 = vunpack.c.h.b16 %v273
    %v1133 = vunpack.c.l.b16 %v274
    %v1134 = vunpack.c.h.b16 %v274
    %v1135 = vunpack.c.l.b16 %v275
    %v1136 = vunpack.c.h.b16 %v275
    %v1137 = vunpack.c.l.b16 %v276
    %v1138 = vunpack.c.h.b16 %v276
    %v1139 = vunpack.c.l.b16 %v277
    %v1140 = vunpack.c.h.b16 %v277
    %v1141 = vunpack.c.l.b16 %v278
    %v1142 = vunpack.c.h.b16 %v278
    %v1143 = vunpack.c.l.b16 %v279
    %v1144 = vunpack.c.h.b16 %v279
    %v1145 = vunpack.c.l.b16 %v280
    %v1146 = vunpack.c.h.b16 %v280
    %v1147 = vunpack.c.l.b16 %v281
    %v1148 = vunpack.c.h.b16 %v281
    %v1149 = vunpack.c.l.b16 %v282
    %v1150 = vunpack.c.h.b16 %v282
    %v1151 = vunpack.c.l.b16 %v283
    %v1152 = vunpack.c.h.b16 %v283
    %v1153 = vunpack.c.l.b16 %v284
    %v1154 = vunpack.c.h.b16 %v284
    %v1155 = vunpack.c.l.b16 %v285
    %v1156 = vunpack.c.h.b16 %v285
    %v1157 = vunpack.c.l.b16 %v286
    %v1158 = vunpack.c.h.b16 %v286
    %v1159 = vunpack.c.l.b16 %v287
    %v1160 = vunpack.c.h.b16 %v287
    %v1161 = vunpack.c.l.b16 %v288
    %v1162 = vunpack.c.h.b16 %v288
    %v1163 = vunpack.c.l.b16 %v289
    %v1164 = vunpack.c.h.b16 %v289
    %v1165 = vunpack.c.l.b16 %v290
    %v1166 = vunpack.c.h.b16 %v290
    %v1167 = vunpack.c.l.b16 %v291
    %v1168 = vunpack.c.h.b16 %v291
    %v1169 = vunpack.c.l.b16 %v292
    %v1170 = vunpack.c.h.b16 %v292
    %v1171 = vunpack.c.l.b16 %v293
    %v1172 = vunpack.c.h.b16 %v293
    %v1173 = vunpack.c.l.b16 %v294
    %v1174 = vunpack.c.h.b16 %v294
    %v1175 = vunpack.c.l.b16 %v295
    %v1176 = vunpack.c.h.b16 %v295
    %v1177 = vunpack.c.l.b16 %v296
    %v1178 = vunpack.c.h.b16 %v296
    %v1179 = vunpack.c.l.b16 %v297
    %v1180 = vunpack.c.h.b16 %v297
    %v1181 = vunpack.c.l.b16 %v298
    %v1182 = vunpack.c.h.b16 %v298
    %v1183 = vunpack.c.l.b16 %v299
    %v1184 = vunpack.c.h.b16 %v299
    %v1185 = vunpack.c.l.b16 %v300
    %v1186 = vunpack.c.h.b16 %v300
    %v1187 = vunpack.c.l.b16 %v301
    %v1188 = vunpack.c.h.b16 %v301
    %v1189 = vunpack.c.l.b16 %v302
    %v1190 = vunpack.c.h.b16 %v302
    %v1191 = vunpack.c.l.b16 %v303
    %v1192 = vunpack.c.h.b16 %v303
    %v1193 = vunpack.c.l.b16 %v304
    %v1194 = vunpack.c.h.b16 %v304
    %v1195 = vunpack.c.l.b16 %v305
    %v1196 = vunpack.c.h.b16 %v305
    %v1197 = vunpack.c.l.b16 %v306
    %v1198 = vunpack.c.h.b16 %v306
    %v1199 = vunpack.c.l.b16 %v307
    %v1200 = vunpack.c.h.b16 %v307
    %v1201 = vunpack.c.l.b16 %v308
    %v1202 = vunpack.c.h.b16 %v308
    %v1203 = vunpack.c.l.b16 %v309
    %v1204 = vunpack.c.h.b16 %v309
    %v1205 = vunpack.c.l.b16 %v310
    %v1206 = vunpack.c.h.b16 %v310
    %v1207 = vunpack.c.l.b16 %v311
    %v1208 = vunpack.c.h.b16 %v311
    %v1209 = vunpack.c.l.b16 %v312
    %v1210 = vunpack.c.h.b16 %v312
    %v1211 = vunpack.c.l.b16 %v313
    %v1212 = vunpack.c.h.b16 %v313
    %v1213 = vunpack.c.l.b16 %v314
    %v1214 = vunpack.c.h.b16 %v314
    %v1215 = vunpack.c.l.b16 %v315
    %v1216 = vunpack.c.h.b16 %v315
    %v1217 = vunpack.c.l.b16 %v316
    %v1218 = vunpack.c.h.b16 %v316
    %v1219 = vunpack.c.l.b16 %v317
    %v1220 = vunpack.c.h.b16 %v317
    %v1221 = vunpack.c.l.b16 %v318
    %v1222 = vunpack.c.h.b16 %v318
    %v1223 = vunpack.c.l.b16 %v319
    %v1224 = vunpack.c.h.b16 %v319
    %v1225 = vunpack.c.l.b16 %v320
    %v1226 = vunpack.c.h.b16 %v320
    %v1227 = vunpack.c.l.b16 %v321
    %v1228 = vunpack.c.h.b16 %v321
    %v1229 = vunpack.c.l.b16 %v322
    %v1230 = vunpack.c.h.b16 %v322
    %v1231 = vunpack.c.l.b16 %v323
    %v1232 = vunpack.c.h.b16 %v323
    %v1233 = vunpack.c.l.b16 %v324
    %v1234 = vunpack.c.h.b16 %v324
    %v1235 = vunpack.c.l.b16 %v325
    %v1236 = vunpack.c.h.b16 %v325
    %v1237 = vunpack.c.l.b16 %v326
    %v1238 = vunpack.c.h.b16 %v326
    %v1239 = vunpack.c.l.b16 %v327
    %v1240 = vunpack.c.h.b16 %v327
    %v1241 = vunpack.c.l.b16 %v328
    %v1242 = vunpack.c.h.b16 %v328
    %v1243 = vunpack.c.l.b16 %v329
    %v1244 = vunpack.c.h.b16 %v329
    %v1245 = vunpack.c.l.b16 %v330
    %v1246 = vunpack.c.h.b16 %v330
    %v1247 = vunpack.c.l.b16 %v331
    %v1248 = vunpack.c.h.b16 %v331
    %v1249 = vunpack.c.l.b16 %v332
    %v1250 = vunpack.c.h.b16 %v332
    %v1251 = vunpack.c.l.b16 %v333
    %v1252 = vunpack.c.h.b16 %v333
    %v1253 = vunpack.c.l.b16 %v334
    %v1254 = vunpack.c.h.b16 %v334
    %v1255 = vunpack.c.l.b16 %v335
    %v1256 = vunpack.c.h.b16 %v335
    %v1257 = vunpack.c.l.b16 %v336
    %v1258 = vunpack.c.h.b16 %v336
    %v1259 = vunpack.c.l.b16 %v337
    %v1260 = vunpack.c.h.b16 %v337
    %v1261 = vunpack.c.l.b16 %v338
    %v1262 = vunpack.c.h.b16 %v338
    %v1263 = vunpack.c.l.b16 %v339
    %v1264 = vunpack.c.h.b16 %v339
    %v1265 = vunpack.c.l.b16 %v340
    %v1266 = vunpack.c.h.b16 %v340
    %v1267 = vunpack.c.l.b16 %v341
    %v1268 = vunpack.c.h.b16 %v341
    %v1269 = vunpack.c.l.b16 %v342
    %v1270 = vunpack.c.h.b16 %v342
    %v1271 = vunpack.c.l.b16 %v343
    %v1272 = vunpack.c.h.b16 %v343
    %v1273 = vunpack.c.l.b16 %v344
    %v1274 = vunpack.c.h.b16 %v344
    %v1275 = vunpack.c.l.b16 %v345
    %v1276 = vunpack.c.h.b16 %v345
    %v1277 = vunpack.c.l.b16 %v346
    %v1278 = vunpack.c.h.b16 %v346
    %v1279 = vunpack.c.l.b16 %v347
    %v1280 = vunpack.c.h.b16 %v347
    %v1281 = vunpack.c.l.b16 %v348
    %v1282 = vunpack.c.h.b16 %v348
    %v1283 = vunpack.c.l.b16 %v349
    %v1284 = vunpack.c.h.b16 %v349
    %v1285 = vunpack.c.l.b16 %v350
    %v1286 = vunpack.c.h.b16 %v350
    %v1287 = vunpack.c.l.b16 %v351
    %v1288 = vunpack.c.h.b16 %v351
    %v1289 = vunpack.c.l.b16 %v352
    %v1290 = vunpack.c.h.b16 %v352
    %v1291 = vunpack.c.l.b16 %v353
    %v1292 = vunpack.c.h.b16 %v353
    %v1293 = vunpack.c.l.b16 %v354
    %v1294 = vunpack.c.h.b16 %v354
    %v1295 = vunpack.c.l.b16 %v355
    %v1296 = vunpack.c.h.b16 %v355
    %v1297 = vunpack.c.l.b16 %v356
    %v1298 = vunpack.c.h.b16 %v356
    %v1299 = vunpack.c.l.b16 %v357
    %v1300 = vunpack.c.h.b16 %v357
    %v1301 = vunpack.c.l.b16 %v358
    %v1302 = vunpack.c.h.b16 %v358
    %v1303 = vunpack.c.l.b16 %v359
    %v1304 = vunpack.c.h.b16 %v359
    %v1305 = vunpack.c.l.b16 %v360
    %v1306 = vunpack.c.h.b16 %v360
    %v1307 = vunpack.c.l.b16 %v361
    %v1308 = vunpack.c.h.b16 %v361
    %v1309 = vunpack.c.l.b16 %v362
    %v1310 = vunpack.c.h.b16 %v362
    %v1311 = vunpack.c.l.b16 %v363
    %v1312 = vunpack.c.h.b16 %v363
    %v1313 = vunpack.c.l.b16 %v364
    %v1314 = vunpack.c.h.b16 %v364
    %v1315 = vunpack.c.l.b16 %v365
    %v1316 = vunpack.c.h.b16 %v365
    %v1317 = vunpack.c.l.b16 %v366
    %v1318 = vunpack.c.h.b16 %v366
    %v1319 = vunpack.c.l.b16 %v367
    %v1320 = vunpack.c.h.b16 %v367
    %v1321 = vunpack.c.l.b16 %v368
    %v1322 = vunpack.c.h.b16 %v368
    %v1323 = vunpack.c.l.b16 %v369
    %v1324 = vunpack.c.h.b16 %v369
    %v1325 = vunpack.c.l.b16 %v370
    %v1326 = vunpack.c.h.b16 %v370
    %v1327 = vunpack.c.l.b16 %v371
    %v1328 = vunpack.c.h.b16 %v371
    %v1329 = vunpack.c.l.b16 %v372
    %v1330 = vunpack.c.h.b16 %v372
    %v1331 = vunpack.c.l.b16 %v373
    %v1332 = vunpack.c.h.b16 %v373
    %v1333 = vunpack.c.l.b16 %v374
    %v1334 = vunpack.c.h.b16 %v374
    %v1335 = vunpack.c.l.b16 %v375
    %v1336 = vunpack.c.h.b16 %v375
    %v1337 = vunpack.c.l.b16 %v376
    %v1338 = vunpack.c.h.b16 %v376
    %v1339 = vunpack.c.l.b16 %v377
    %v1340 = vunpack.c.h.b16 %v377
    %v1341 = vunpack.c.l.b16 %v378
    %v1342 = vunpack.c.h.b16 %v378
    %v1343 = vunpack.c.l.b16 %v379
    %v1344 = vunpack.c.h.b16 %v379
    %v1345 = vunpack.c.l.b16 %v380
    %v1346 = vunpack.c.h.b16 %v380
    %v1347 = vunpack.c.l.b16 %v381
    %v1348 = vunpack.c.h.b16 %v381
    %v1349 = vunpack.c.l.b16 %v382
    %v1350 = vunpack.c.h.b16 %v382
    %v1351 = vunpack.c.l.b16 %v383
    %v1352 = vunpack.c.h.b16 %v383
    %v1353 = vunpack.c.l.b16 %v384
    %v1354 = vunpack.c.h.b16 %v384
    %v1355 = vunpack.c.l.b16 %v385
    %v1356 = vunpack.c.h.b16 %v385
    %v1357 = vunpack.c.l.b16 %v386
    %v1358 = vunpack.c.h.b16 %v386
    %v1359 = vunpack.c.l.b16 %v387
    %v1360 = vunpack.c.h.b16 %v387
    %v1361 = vunpack.c.l.b16 %v388
    %v1362 = vunpack.c.h.b16 %v388
    %v1363 = vunpack.c.l.b16 %v389
    %v1364 = vunpack.c.h.b16 %v389
    %v1365 = vunpack.c.l.b16 %v390
    %v1366 = vunpack.c.h.b16 %v390
    %v1367 = vunpack.c.l.b16 %v391
    %v1368 = vunpack.c.h.b16 %v391
    %v1369 = vunpack.c.l.b16 %v392
    %v1370 = vunpack.c.h.b16 %v392
    %v1371 = vunpack.c.l.b16 %v393
    %v1372 = vunpack.c.h.b16 %v393
    %v1373 = vunpack.c.l.b16 %v394
    %v1374 = vunpack.c.h.b16 %v394
    %v1375 = vunpack.c.l.b16 %v395
    %v1376 = vunpack.c.h.b16 %v395
    %v1377 = vunpack.c.l.b16 %v396
    %v1378 = vunpack.c.h.b16 %v396
    %v1379 = vunpack.c.l.b16 %v397
    %v1380 = vunpack.c.h.b16 %v397
    %v1381 = vunpack.c.l.b16 %v398
    %v1382 = vunpack.c.h.b16 %v398
    %v1383 = vunpack.c.l.b16 %v399
    %v1384 = vunpack.c.h.b16 %v399
    %v1385 = vunpack.c.l.b16 %v400
    %v1386 = vunpack.c.h.b16 %v400
    %v1387 = vunpack.c.l.b16 %v401
    %v1388 = vunpack.c.h.b16 %v401
    %v1389 = vunpack.c.l.b16 %v402
    %v1390 = vunpack.c.h.b16 %v402
    %v1391 = vunpack.c.l.b16 %v403
    %v1392 = vunpack.c.h.b16 %v403
    %v1393 = vunpack.c.l.b16 %v404
    %v1394 = vunpack.c.h.b16 %v404
    %v1395 = vunpack.c.l.b16 %v405
    %v1396 = vunpack.c.h.b16 %v405
    %v1397 = vunpack.c.l.b16 %v406
    %v1398 = vunpack.c.h.b16 %v406
    %v1399 = vunpack.c.l.b16 %v407
    %v1400 = vunpack.c.h.b16 %v407
    %v1401 = vunpack.c.l.b16 %v408
    %v1402 = vunpack.c.h.b16 %v408
    %v1403 = vunpack.c.l.b16 %v409
    %v1404 = vunpack.c.h.b16 %v409
    %v1405 = vunpack.c.l.b16 %v410
    %v1406 = vunpack.c.h.b16 %v410
    %v1407 = vunpack.c.l.b16 %v411
    %v1408 = vunpack.c.h.b16 %v411
    %v1409 = vunpack.c.l.b16 %v412
    %v1410 = vunpack.c.h.b16 %v412
    %v1411 = vunpack.c.l.b16 %v413
    %v1412 = vunpack.c.h.b16 %v413
    %v1413 = vunpack.c.l.b16 %v414
    %v1414 = vunpack.c.h.b16 %v414
    %v1415 = vunpack.c.l.b16 %v415
    %v1416 = vunpack.c.h.b16 %v415
    %v1417 = vunpack.c.l.b16 %v416
    %v1418 = vunpack.c.h.b16 %v416
    %v1419 = vunpack.c.l.b16 %v417
    %v1420 = vunpack.c.h.b16 %v417
    %v1421 = vunpack.c.l.b16 %v418
    %v1422 = vunpack.c.h.b16 %v418
    %v1423 = vunpack.c.l.b16 %v419
    %v1424 = vunpack.c.h.b16 %v419
    %v1425 = vunpack.c.l.b16 %v420
    %v1426 = vunpack.c.h.b16 %v420
    %v1427 = vunpack.c.l.b16 %v421
    %v1428 = vunpack.c.h.b16 %v421
    %v1429 = vunpack.c.l.b16 %v422
    %v1430 = vunpack.c.h.b16 %v422
    %v1431 = vunpack.c.l.b16 %v423
    %v1432 = vunpack.c.h.b16 %v423
    %v1433 = vunpack.c.l.b16 %v424
    %v1434 = vunpack.c.h.b16 %v424
    %v1435 = vunpack.c.l.b16 %v425
    %v1436 = vunpack.c.h.b16 %v425
    %v1437 = vunpack.c.l.b16 %v426
    %v1438 = vunpack.c.h.b16 %v426
    %v1439 = vunpack.c.l.b16 %v427
    %v1440 = vunpack.c.h.b16 %v427
    %v1441 = vunpack.c.l.b16 %v428
    %v1442 = vunpack.c.h.b16 %v428
    %v1443 = vunpack.c.l.b16 %v429
    %v1444 = vunpack.c.h.b16 %v429
    %v1445 = vunpack.c.l.b16 %v430
    %v1446 = vunpack.c.h.b16 %v430
    %v1447 = vunpack.c.l.b16 %v431
    %v1448 = vunpack.c.h.b16 %v431
    %v1449 = vunpack.c.l.b16 %v432
    %v1450 = vunpack.c.h.b16 %v432
    %v1451 = vunpack.c.l.b16 %v433
    %v1452 = vunpack.c.h.b16 %v433
    %v1453 = vunpack.c.l.b16 %v434
    %v1454 = vunpack.c.h.b16 %v434
    %v1455 = vunpack.c.l.b16 %v435
    %v1456 = vunpack.c.h.b16 %v435
    %v1457 = vunpack.c.l.b16 %v436
    %v1458 = vunpack.c.h.b16 %v436
    %v1459 = vunpack.c.l.b16 %v437
    %v1460 = vunpack.c.h.b16 %v437
    %v1461 = vunpack.c.l.b16 %v438
    %v1462 = vunpack.c.h.b16 %v438
    %v1463 = vunpack.c.l.b16 %v439
    %v1464 = vunpack.c.h.b16 %v439
    %v1465 = vunpack.c.l.b16 %v440
    %v1466 = vunpack.c.h.b16 %v440
    %v1467 = vunpack.c.l.b16 %v441
    %v1468 = vunpack.c.h.b16 %v441
    %v1469 = vunpack.c.l.b16 %v442
    %v1470 = vunpack.c.h.b16 %v442
    %v1471 = vunpack.c.l.b16 %v443
    %v1472 = vunpack.c.h.b16 %v443
    %v1473 = vunpack.c.l.b16 %v444
    %v1474 = vunpack.c.h.b16 %v444
    %v1475 = vunpack.c.l.b16 %v445
    %v1476 = vunpack.c.h.b16 %v445
    %v1477 = vunpack.c.l.b16 %v446
    %v1478 = vunpack.c.h.b16 %v446
    %v1479 = vpack.c.b16 %v843, %v839
    %v1480 = vpack.c.b16 %v844, %v840
    %v1481 = vpack.c.b16 %v845, %v841
    %v1482 = vpack.c.b16 %v846, %v842
    %v1483 = vpack.c.b16 %v851, %v847
    %v1484 = vpack.c.b16 %v852, %v848
    %v1485 = vpack.c.b16 %v853, %v849
    %v1486 = vpack.c.b16 %v854, %v850
    %v1487 = vpack.c.b16 %v859, %v855
    %v1488 = vpack.c.b16 %v860, %v856
    %v1489 = vpack.c.b16 %v861, %v857
    %v1490 = vpack.c.b16 %v862, %v858
    %v1491 = vpack.c.b16 %v867, %v863
    %v1492 = vpack.c.b16 %v868, %v864
    %v1493 = vpack.c.b16 %v869, %v865
    %v1494 = vpack.c.b16 %v870, %v866
    %v1495 = vpack.c.b16 %v875, %v871
    %v1496 = vpack.c.b16 %v876, %v872
    %v1497 = vpack.c.b16 %v877, %v873
    %v1498 = vpack.c.b16 %v878, %v874
    %v1499 = vpack.c.b16 %v883, %v879
    %v1500 = vpack.c.b16 %v884, %v880
    %v1501 = vpack.c.b16 %v885, %v881
    %v1502 = vpack.c.b16 %v886, %v882
    %v1503 = vpack.c.b16 %v891, %v887
    %v1504 = vpack.c.b16 %v892, %v888
    %v1505 = vpack.c.b16 %v893, %v889
    %v1506 = vpack.c.b16 %v894, %v890
    %v1507 = vpack.c.b16 %v899, %v895
    %v1508 = vpack.c.b16 %v900, %v896
    %v1509 = vpack.c.b16 %v901, %v897
    %v1510 = vpack.c.b16 %v902, %v898
    %v1511 = vpack.c.b16 %v907, %v903
    %v1512 = vpack.c.b16 %v908, %v904
    %v1513 = vpack.c.b16 %v909, %v905
    %v1514 = vpack.c.b16 %v910, %v906
    %v1515 = vpack.c.b16 %v915, %v911
    %v1516 = vpack.c.b16 %v916, %v912
    %v1517 = vpack.c.b16 %v917, %v913
    %v1518 = vpack.c.b16 %v918, %v914
    %v1519 = vpack.c.b16 %v923, %v919
    %v1520 = vpack.c.b16 %v924, %v920
    %v1521 = vpack.c.b16 %v925, %v921
    %v1522 = vpack.c.b16 %v926, %v922
    %v1523 = vpack.c.b16 %v931, %v927
    %v1524 = vpack.c.b16 %v932, %v928
    %v1525 = vpack.c.b16 %v933, %v929
    %v1526 = vpack.c.b16 %v934, %v930
    %v1527 = vpack.c.b16 %v939, %v935
    %v1528 = vpack.c.b16 %v940, %v936
    %v1529 = vpack.c.b16 %v941, %v937
    %v1530 = vpack.c.b16 %v942, %v938
    %v1531 = vpack.c.b16 %v947, %v943
    %v1532 = vpack.c.b16 %v948, %v944
    %v1533 = vpack.c.b16 %v949, %v945
    %v1534 = vpack.c.b16 %v950, %v946
    %v1535 = vpack.c.b16 %v955, %v951
    %v1536 = vpack.c.b16 %v956, %v952
    %v1537 = vpack.c.b16 %v957, %v953
    %v1538 = vpack.c.b16 %v958, %v954
    %v1539 = vpack.c.b16 %v963, %v959
    %v1540 = vpack.c.b16 %v964, %v960
    %v1541 = vpack.c.b16 %v965, %v961
    %v1542 = vpack.c.b16 %v966, %v962
    %v1543 = vpack.c.b16 %v971, %v967
    %v1544 = vpack.c.b16 %v972, %v968
    %v1545 = vpack.c.b16 %v973, %v969
    %v1546 = vpack.c.b16 %v974, %v970
    %v1547 = vpack.c.b16 %v979, %v975
    %v1548 = vpack.c.b16 %v980, %v976
    %v1549 = vpack.c.b16 %v981, %v977
    %v1550 = vpack.c.b16 %v982, %v978
    %v1551 = vpack.c.b16 %v987, %v983
    %v1552 = vpack.c.b16 %v988, %v984
    %v1553 = vpack.c.b16 %v989, %v985
    %v1554 = vpack.c.b16 %v990, %v986
    %v1555 = vpack.c.b16 %v995, %v991
    %v1556 = vpack.c.b16 %v996, %v992
    %v1557 = vpack.c.b16 %v997, %v993
    %v1558 = vpack.c.b16 %v998, %v994
    %v1559 = vpack.c.b16 %v1003, %v999
    %v1560 = vpack.c.b16 %v1004, %v1000
    %v1561 = vpack.c.b16 %v1005, %v1001
    %v1562 = vpack.c.b16 %v1006, %v1002
    %v1563 = vpack.c.b16 %v1011, %v1007
    %v1564 = vpack.c.b16 %v1012, %v1008
    %v1565 = vpack.c.b16 %v1013, %v1009
    %v1566 = vpack.c.b16 %v1014, %v1010
    %v1567 = vpack.c.b16 %v1019, %v1015
    %v1568 = vpack.c.b16 %v1020, %v1016
    %v1569 = vpack.c.b16 %v1021, %v1017
    %v1570 = vpack.c.b16 %v1022, %v1018
    %v1571 = vpack.c.b16 %v1027, %v1023
    %v1572 = vpack.c.b16 %v1028, %v1024
    %v1573 = vpack.c.b16 %v1029, %v1025
    %v1574 = vpack.c.b16 %v1030, %v1026
    %v1575 = vpack.c.b16 %v1035, %v1031
    %v1576 = vpack.c.b16 %v1036, %v1032
    %v1577 = vpack.c.b16 %v1037, %v1033
    %v1578 = vpack.c.b16 %v1038, %v1034
    %v1579 = vpack.c.b16 %v1043, %v1039
    %v1580 = vpack.c.b16 %v1044, %v1040
    %v1581 = vpack.c.b16 %v1045, %v1041
    %v1582 = vpack.c.b16 %v1046, %v1042
    %v1583 = vpack.c.b16 %v1051, %v1047
    %v1584 = vpack.c.b16 %v1052, %v1048
    %v1585 = vpack.c.b16 %v1053, %v1049
    %v1586 = vpack.c.b16 %v1054, %v1050
    %v1587 = vpack.c.b16 %v1059, %v1055
    %v1588 = vpack.c.b16 %v1060, %v1056
    %v1589 = vpack.c.b16 %v1061, %v1057
    %v1590 = vpack.c.b16 %v1062, %v1058
    %v1591 = vpack.c.b16 %v1067, %v1063
    %v1592 = vpack.c.b16 %v1068, %v1064
    %v1593 = vpack.c.b16 %v1069, %v1065
    %v1594 = vpack.c.b16 %v1070, %v1066
    %v1595 = vpack.c.b16 %v1075, %v1071
    %v1596 = vpack.c.b16 %v1076, %v1072
    %v1597 = vpack.c.b16 %v1077, %v1073
    %v1598 = vpack.c.b16 %v1078, %v1074
    %v1599 = vpack.c.b16 %v1083, %v1079
    %v1600 = vpack.c.b16 %v1084, %v1080
    %v1601 = vpack.c.b16 %v1085, %v1081
    %v1602 = vpack.c.b16 %v1086, %v1082
    %v1603 = vpack.c.b16 %v1091, %v1087
    %v1604 = vpack.c.b16 %v1092, %v1088
    %v1605 = vpack.c.b16 %v1093, %v1089
    %v1606 = vpack.c.b16 %v1094, %v1090
    %v1607 = vpack.c.b16 %v1099, %v1095
    %v1608 = vpack.c.b16 %v1100, %v1096
    %v1609 = vpack.c.b16 %v1101, %v1097
    %v1610 = vpack.c.b16 %v1102, %v1098
    %v1611 = vpack.c.b16 %v1107, %v1103
    %v1612 = vpack.c.b16 %v1108, %v1104
    %v1613 = vpack.c.b16 %v1109, %v1105
    %v1614 = vpack.c.b16 %v1110, %v1106
    %v1615 = vpack.c.b16 %v1115, %v1111
    %v1616 = vpack.c.b16 %v1116, %v1112
    %v1617 = vpack.c.b16 %v1117, %v1113
    %v1618 = vpack.c.b16 %v1118, %v1114
    %v1619 = vpack.c.b16 %v1123, %v1119
    %v1620 = vpack.c.b16 %v1124, %v1120
    %v1621 = vpack.c.b16 %v1125, %v1121
    %v1622 = vpack.c.b16 %v1126, %v1122
    %v1623 = vpack.c.b16 %v1131, %v1127
    %v1624 = vpack.c.b16 %v1132, %v1128
    %v1625 = vpack.c.b16 %v1133, %v1129
    %v1626 = vpack.c.b16 %v1134, %v1130
    %v1627 = vpack.c.b16 %v1139, %v1135
    %v1628 = vpack.c.b16 %v1140, %v1136
    %v1629 = vpack.c.b16 %v1141, %v1137
    %v1630 = vpack.c.b16 %v1142, %v1138
    %v1631 = vpack.c.b16 %v1147, %v1143
    %v1632 = vpack.c.b16 %v1148, %v1144
    %v1633 = vpack.c.b16 %v1149, %v1145
    %v1634 = vpack.c.b16 %v1150, %v1146
    %v1635 = vpack.c.b16 %v1155, %v1151
    %v1636 = vpack.c.b16 %v1156, %v1152
    %v1637 = vpack.c.b16 %v1157, %v1153
    %v1638 = vpack.c.b16 %v1158, %v1154
    %v1639 = vpack.c.b16 %v1163, %v1159
    %v1640 = vpack.c.b16 %v1164, %v1160
    %v1641 = vpack.c.b16 %v1165, %v1161
    %v1642 = vpack.c.b16 %v1166, %v1162
    %v1643 = vpack.c.b16 %v1171, %v1167
    %v1644 = vpack.c.b16 %v1172, %v1168
    %v1645 = vpack.c.b16 %v1173, %v1169
    %v1646 = vpack.c.b16 %v1174, %v1170
    %v1647 = vpack.c.b16 %v1179, %v1175
    %v1648 = vpack.c.b16 %v1180, %v1176
    %v1649 = vpack.c.b16 %v1181, %v1177
    %v1650 = vpack.c.b16 %v1182, %v1178
    %v1651 = vpack.c.b16 %v1187, %v1183
    %v1652 = vpack.c.b16 %v1188, %v1184
    %v1653 = vpack.c.b16 %v1189, %v1185
    %v1654 = vpack.c.b16 %v1190, %v1186
    %v1655 = vpack.c.b16 %v1195, %v1191
    %v1656 = vpack.c.b16 %v1196, %v1192
    %v1657 = vpack.c.b16 %v1197, %v1193
    %v1658 = vpack.c.b16 %v1198, %v1194
    %v1659 = vpack.c.b16 %v1203, %v1199
    %v1660 = vpack.c.b16 %v1204, %v1200
    %v1661 = vpack.c.b16 %v1205, %v1201
    %v1662 = vpack.c.b16 %v1206, %v1202
    %v1663 = vpack.c.b16 %v1211, %v1207
    %v1664 = vpack.c.b16 %v1212, %v1208
    %v1665 = vpack.c.b16 %v1213, %v1209
    %v1666 = vpack.c.b16 %v1214, %v1210
    %v1667 = vpack.c.b16 %v1219, %v1215
    %v1668 = vpack.c.b16 %v1220, %v1216
    %v1669 = vpack.c.b16 %v1221, %v1217
    %v1670 = vpack.c.b16 %v1222, %v1218
    %v1671 = vpack.c.b16 %v1227, %v1223
    %v1672 = vpack.c.b16 %v1228, %v1224
    %v1673 = vpack.c.b16 %v1229, %v1225
    %v1674 = vpack.c.b16 %v1230, %v1226
    %v1675 = vpack.c.b16 %v1235, %v1231
    %v1676 = vpack.c.b16 %v1236, %v1232
    %v1677 = vpack.c.b16 %v1237, %v1233
    %v1678 = vpack.c.b16 %v1238, %v1234
    %v1679 = vpack.c.b16 %v1243, %v1239
    %v1680 = vpack.c.b16 %v1244, %v1240
    %v1681 = vpack.c.b16 %v1245, %v1241
    %v1682 = vpack.c.b16 %v1246, %v1242
    %v1683 = vpack.c.b16 %v1251, %v1247
    %v1684 = vpack.c.b16 %v1252, %v1248
    %v1685 = vpack.c.b16 %v1253, %v1249
    %v1686 = vpack.c.b16 %v1254, %v1250
    %v1687 = vpack.c.b16 %v1259, %v1255
    %v1688 = vpack.c.b16 %v1260, %v1256
    %v1689 = vpack.c.b16 %v1261, %v1257
    %v1690 = vpack.c.b16 %v1262, %v1258
    %v1691 = vpack.c.b16 %v1267, %v1263
    %v1692 = vpack.c.b16 %v1268, %v1264
    %v1693 = vpack.c.b16 %v1269, %v1265
    %v1694 = vpack.c.b16 %v1270, %v1266
    %v1695 = vpack.c.b16 %v1275, %v1271
    %v1696 = vpack.c.b16 %v1276, %v1272
    %v1697 = vpack.c.b16 %v1277, %v1273
    %v1698 = vpack.c.b16 %v1278, %v1274
    %v1699 = vpack.c.b16 %v1283, %v1279
    %v1700 = vpack.c.b16 %v1284, %v1280
    %v1701 = vpack.c.b16 %v1285, %v1281
    %v1702 = vpack.c.b16 %v1286, %v1282
    %v1703 = vpack.c.b16 %v1291, %v1287
    %v1704 = vpack.c.b16 %v1292, %v1288
    %v1705 = vpack.c.b16 %v1293, %v1289
    %v1706 = vpack.c.b16 %v1294, %v1290
    %v1707 = vpack.c.b16 %v1299, %v1295
    %v1708 = vpack.c.b16 %v1300, %v1296
    %v1709 = vpack.c.b16 %v1301, %v1297
    %v1710 = vpack.c.b16 %v1302, %v1298
    %v1711 = vpack.c.b16 %v1307, %v1303
    %v1712 = vpack.c.b16 %v1308, %v1304
    %v1713 = vpack.c.b16 %v1309, %v1305
    %v1714 = vpack.c.b16 %v1310, %v1306
    %v1715 = vpack.c.b16 %v1315, %v1311
    %v1716 = vpack.c.b16 %v1316, %v1312
    %v1717 = vpack.c.b16 %v1317, %v1313
    %v1718 = vpack.c.b16 %v1318, %v1314
    %v1719 = vpack.c.b16 %v1323, %v1319
    %v1720 = vpack.c.b16 %v1324, %v1320
    %v1721 = vpack.c.b16 %v1325, %v1321
    %v1722 = vpack.c.b16 %v1326, %v1322
    %v1723 = vpack.c.b16 %v1331, %v1327
    %v1724 = vpack.c.b16 %v1332, %v1328
    %v1725 = vpack.c.b16 %v1333, %v1329
    %v1726 = vpack.c.b16 %v1334, %v1330
    %v1727 = vpack.c.b16 %v1339, %v1335
    %v1728 = vpack.c.b16 %v1340, %v1336
    %v1729 = vpack.c.b16 %v1341, %v1337
    %v1730 = vpack.c.b16 %v1342, %v1338
    %v1731 = vpack.c.b16 %v1347, %v1343
    %v1732 = vpack.c.b16 %v1348, %v1344
    %v1733 = vpack.c.b16 %v1349, %v1345
    %v1734 = vpack.c.b16 %v1350, %v1346
    %v1735 = vpack.c.b16 %v1355, %v1351
    %v1736 = vpack.c.b16 %v1356, %v1352
    %v1737 = vpack.c.b16 %v1357, %v1353
    %v1738 = vpack.c.b16 %v1358, %v1354
    %v1739 = vpack.c.b16 %v1363, %v1359
    %v1740 = vpack.c.b16 %v1364, %v1360
    %v1741 = vpack.c.b16 %v1365, %v1361
    %v1742 = vpack.c.b16 %v1366, %v1362
    %v1743 = vpack.c.b16 %v1371, %v1367
    %v1744 = vpack.c.b16 %v1372, %v1368
    %v1745 = vpack.c.b16 %v1373, %v1369
    %v1746 = vpack.c.b16 %v1374, %v1370
    %v1747 = vpack.c.b16 %v1379, %v1375
    %v1748 = vpack.c.b16 %v1380, %v1376
    %v1749 = vpack.c.b16 %v1381, %v1377
    %v1750 = vpack.c.b16 %v1382, %v1378
    %v1751 = vpack.c.b16 %v1387, %v1383
    %v1752 = vpack.c.b16 %v1388, %v1384
    %v1753 = vpack.c.b16 %v1389, %v1385
    %v1754 = vpack.c.b16 %v1390, %v1386
    %v1755 = vpack.c.b16 %v1395, %v1391
    %v1756 = vpack.c.b16 %v1396, %v1392
    %v1757 = vpack.c.b16 %v1397, %v1393
    %v1758 = vpack.c.b16 %v1398, %v1394
    %v1759 = vpack.c.b16 %v1403, %v1399
    %v1760 = vpack.c.b16 %v1404, %v1400
    %v1761 = vpack.c.b16 %v1405, %v1401
    %v1762 = vpack.c.b16 %v1406, %v1402
    %v1763 = vpack.c.b16 %v1411, %v1407
    %v1764 = vpack.c.b16 %v1412, %v1408
    %v1765 = vpack.c.b16 %v1413, %v1409
    %v1766 = vpack.c.b16 %v1414, %v1410
    %v1767 = vpack.c.b16 %v1419, %v1415
    %v1768 = vpack.c.b16 %v1420, %v1416
    %v1769 = vpack.c.b16 %v1421, %v1417
    %v1770 = vpack.c.b16 %v1422, %v1418
    %v1771 = vpack.c.b16 %v1427, %v1423
    %v1772 = vpack.c.b16 %v1428, %v1424
    %v1773 = vpack.c.b16 %v1429, %v1425
    %v1774 = vpack.c.b16 %v1430, %v1426
    %v1775 = vpack.c.b16 %v1435, %v1431
    %v1776 = vpack.c.b16 %v1436, %v1432
    %v1777 = vpack.c.b16 %v1437, %v1433
    %v1778 = vpack.c.b16 %v1438, %v1434
    %v1779 = vpack.c.b16 %v1443, %v1439
    %v1780 = vpack.c.b16 %v1444, %v1440
    %v1781 = vpack.c.b16 %v1445, %v1441
    %v1782 = vpack.c.b16 %v1446, %v1442
    %v1783 = vpack.c.b16 %v1451, %v1447
    %v1784 = vpack.c.b16 %v1452, %v1448
    %v1785 = vpack.c.b16 %v1453, %v1449
    %v1786 = vpack.c.b16 %v1454, %v1450
    %v1787 = vpack.c.b16 %v1459, %v1455
    %v1788 = vpack.c.b16 %v1460, %v1456
    %v1789 = vpack.c.b16 %v1461, %v1457
    %v1790 = vpack.c.b16 %v1462, %v1458
    %v1791 = vpack.c.b16 %v1467, %v1463
    %v1792 = vpack.c.b16 %v1468, %v1464
    %v1793 = vpack.c.b16 %v1469, %v1465
    %v1794 = vpack.c.b16 %v1470, %v1466
    %v1795 = vpack.c.b16 %v1475, %v1471
    %v1796 = vpack.c.b16 %v1476, %v1472
    %v1797 = vpack.c.b16 %v1477, %v1473
    %v1798 = vpack.c.b16 %v1478, %v1474
    %2119 = vmatprep.subr.bf16.mxu0 %v1508
    %2120 = vmatpush1.bf16.msra.mxu0 %v1507
    %2121 = vmatprep.subr.bf16.mxu0 %v1504
    %2122 = vmatpush1.bf16.msra.mxu0 %v1503
    %2123 = vmatprep.subr.bf16.mxu0 %v1500
    %2124 = vmatpush1.bf16.msra.mxu0 %v1499
    %2125 = vmatprep.subr.bf16.mxu0 %v1496
    %2126 = vmatpush1.bf16.msra.mxu0 %v1495
    %2127 = vmatprep.subr.bf16.mxu0 %v1492
    %2128 = vmatpush1.bf16.msra.mxu0 %v1491
    %2129 = vmatprep.subr.bf16.mxu0 %v1488
    %2130 = vmatpush1.bf16.msra.mxu0 %v1487
    %2131 = vmatprep.subr.bf16.mxu0 %v1484
    %2132 = vmatpush1.bf16.msra.mxu0 %v1483
    %2133 = vmatprep.subr.bf16.mxu0 %v1480
    %2134 = vmatpush1.bf16.msra.mxu0 %v1479
    %2135 = vmatprep.subr.bf16.mxu0 %v1540
    %2136 = vmatpush2.bf16.msra.mxu0 %v1539
    %2137 = vmatprep.subr.bf16.mxu0 %v1536
    %2138 = vmatpush2.bf16.msra.mxu0 %v1535
    %2139 = vmatprep.subr.bf16.mxu0 %v1532
    %2140 = vmatpush2.bf16.msra.mxu0 %v1531
    %2141 = vmatprep.subr.bf16.mxu0 %v1528
    %2142 = vmatpush2.bf16.msra.mxu0 %v1527
    %2143 = vmatprep.subr.bf16.mxu0 %v1524
    %2144 = vmatpush2.bf16.msra.mxu0 %v1523
    %2145 = vmatprep.subr.bf16.mxu0 %v1520
    %2146 = vmatpush2.bf16.msra.mxu0 %v1519
    %2147 = vmatprep.subr.bf16.mxu0 %v1516
    %2148 = vmatpush2.bf16.msra.mxu0 %v1515
    %2149 = vmatprep.subr.bf16.mxu0 %v1512
    %2150 = vmatpush2.bf16.msra.mxu0 %v1511
    %2151 = vmatprep.mubr.bf16.mxu0 %v500
    %2152 = vmatmul.mubr.bf16.gmra.mxu0 %v499
    %v2153 = vpop.f32.mrf.mxu0
    %v2154 = vadd.f32 %v452, %v2153
    %v2155 = vpop.f32.mrf.mxu0
    %v2156 = vadd.f32 %v456, %v2155
    %v2157 = vpop.f32.mrf.mxu0
    %v2158 = vadd.f32 %v452, %v2157
    %v2159 = vpop.f32.mrf.mxu0
    %v2160 = vadd.f32 %v456, %v2159
    %2161 = vdwg.mxu0
    %2162 = vmatprep.subr.bf16.mxu0 %v1572
    %2163 = vmatpush1.bf16.msra.mxu0 %v1571
    %2164 = vmatprep.subr.bf16.mxu0 %v1568
    %2165 = vmatpush1.bf16.msra.mxu0 %v1567
    %2166 = vmatprep.subr.bf16.mxu0 %v1564
    %2167 = vmatpush1.bf16.msra.mxu0 %v1563
    %2168 = vmatprep.subr.bf16.mxu0 %v1560
    %2169 = vmatpush1.bf16.msra.mxu0 %v1559
    %2170 = vmatprep.subr.bf16.mxu0 %v1556
    %2171 = vmatpush1.bf16.msra.mxu0 %v1555
    %2172 = vmatprep.subr.bf16.mxu0 %v1552
    %2173 = vmatpush1.bf16.msra.mxu0 %v1551
    %2174 = vmatprep.subr.bf16.mxu0 %v1548
    %2175 = vmatpush1.bf16.msra.mxu0 %v1547
    %2176 = vmatprep.subr.bf16.mxu0 %v1544
    %2177 = vmatpush1.bf16.msra.mxu0 %v1543
    %2178 = vmatprep.subr.bf16.mxu0 %v1604
    %2179 = vmatpush2.bf16.msra.mxu0 %v1603
    %2180 = vmatprep.subr.bf16.mxu0 %v1600
    %2181 = vmatpush2.bf16.msra.mxu0 %v1599
    %2182 = vmatprep.subr.bf16.mxu0 %v1596
    %2183 = vmatpush2.bf16.msra.mxu0 %v1595
    %2184 = vmatprep.subr.bf16.mxu0 %v1592
    %2185 = vmatpush2.bf16.msra.mxu0 %v1591
    %2186 = vmatprep.subr.bf16.mxu0 %v1588
    %2187 = vmatpush2.bf16.msra.mxu0 %v1587
    %2188 = vmatprep.subr.bf16.mxu0 %v1584
    %2189 = vmatpush2.bf16.msra.mxu0 %v1583
    %2190 = vmatprep.subr.bf16.mxu0 %v1580
    %2191 = vmatpush2.bf16.msra.mxu0 %v1579
    %2192 = vmatprep.subr.bf16.mxu0 %v1576
    %2193 = vmatpush2.bf16.msra.mxu0 %v1575
    %2194 = vmatprep.mubr.bf16.mxu0 %v502
    %2195 = vmatmul.mubr.bf16.gmra.mxu0 %v501
    %v2196 = vpop.f32.mrf.mxu0
    %v2197 = vadd.f32 %v2154, %v2196
    %v2198 = vpop.f32.mrf.mxu0
    %v2199 = vadd.f32 %v2156, %v2198
    %v2200 = vpop.f32.mrf.mxu0
    %v2201 = vadd.f32 %v2158, %v2200
    %v2202 = vpop.f32.mrf.mxu0
    %v2203 = vadd.f32 %v2160, %v2202
    %2204 = vdwg.mxu0
    %2205 = vmatprep.subr.bf16.mxu0 %v1636
    %2206 = vmatpush1.bf16.msra.mxu0 %v1635
    %2207 = vmatprep.subr.bf16.mxu0 %v1632
    %2208 = vmatpush1.bf16.msra.mxu0 %v1631
    %2209 = vmatprep.subr.bf16.mxu0 %v1628
    %2210 = vmatpush1.bf16.msra.mxu0 %v1627
    %2211 = vmatprep.subr.bf16.mxu0 %v1624
    %2212 = vmatpush1.bf16.msra.mxu0 %v1623
    %2213 = vmatprep.subr.bf16.mxu0 %v1620
    %2214 = vmatpush1.bf16.msra.mxu0 %v1619
    %2215 = vmatprep.subr.bf16.mxu0 %v1616
    %2216 = vmatpush1.bf16.msra.mxu0 %v1615
    %2217 = vmatprep.subr.bf16.mxu0 %v1612
    %2218 = vmatpush1.bf16.msra.mxu0 %v1611
    %2219 = vmatprep.subr.bf16.mxu0 %v1608
    %2220 = vmatpush1.bf16.msra.mxu0 %v1607
    %2221 = vmatprep.subr.bf16.mxu0 %v1668
    %2222 = vmatpush2.bf16.msra.mxu0 %v1667
    %2223 = vmatprep.subr.bf16.mxu0 %v1664
    %2224 = vmatpush2.bf16.msra.mxu0 %v1663
    %2225 = vmatprep.subr.bf16.mxu0 %v1660
    %2226 = vmatpush2.bf16.msra.mxu0 %v1659
    %2227 = vmatprep.subr.bf16.mxu0 %v1656
    %2228 = vmatpush2.bf16.msra.mxu0 %v1655
    %2229 = vmatprep.subr.bf16.mxu0 %v1652
    %2230 = vmatpush2.bf16.msra.mxu0 %v1651
    %2231 = vmatprep.subr.bf16.mxu0 %v1648
    %2232 = vmatpush2.bf16.msra.mxu0 %v1647
    %2233 = vmatprep.subr.bf16.mxu0 %v1644
    %2234 = vmatpush2.bf16.msra.mxu0 %v1643
    %2235 = vmatprep.subr.bf16.mxu0 %v1640
    %2236 = vmatpush2.bf16.msra.mxu0 %v1639
    %2237 = vmatprep.mubr.bf16.mxu0 %v504
    %2238 = vmatmul.mubr.bf16.gmra.mxu0 %v503
    %v2239 = vpop.f32.mrf.mxu0
    %v2240 = vadd.f32 %v2197, %v2239
    %v2241 = vpop.f32.mrf.mxu0
    %v2242 = vadd.f32 %v2199, %v2241
    %v2243 = vpop.f32.mrf.mxu0
    %v2244 = vadd.f32 %v2201, %v2243
    %v2245 = vpop.f32.mrf.mxu0
    %v2246 = vadd.f32 %v2203, %v2245
    %2247 = vdwg.mxu0
    %2248 = vmatprep.subr.bf16.mxu0 %v1700
    %2249 = vmatpush1.bf16.msra.mxu0 %v1699
    %2250 = vmatprep.subr.bf16.mxu0 %v1696
    %2251 = vmatpush1.bf16.msra.mxu0 %v1695
    %2252 = vmatprep.subr.bf16.mxu0 %v1692
    %2253 = vmatpush1.bf16.msra.mxu0 %v1691
    %2254 = vmatprep.subr.bf16.mxu0 %v1688
    %2255 = vmatpush1.bf16.msra.mxu0 %v1687
    %2256 = vmatprep.subr.bf16.mxu0 %v1684
    %2257 = vmatpush1.bf16.msra.mxu0 %v1683
    %2258 = vmatprep.subr.bf16.mxu0 %v1680
    %2259 = vmatpush1.bf16.msra.mxu0 %v1679
    %2260 = vmatprep.subr.bf16.mxu0 %v1676
    %2261 = vmatpush1.bf16.msra.mxu0 %v1675
    %2262 = vmatprep.subr.bf16.mxu0 %v1672
    %2263 = vmatpush1.bf16.msra.mxu0 %v1671
    %2264 = vmatprep.subr.bf16.mxu0 %v1732
    %2265 = vmatpush2.bf16.msra.mxu0 %v1731
    %2266 = vmatprep.subr.bf16.mxu0 %v1728
    %2267 = vmatpush2.bf16.msra.mxu0 %v1727
    %2268 = vmatprep.subr.bf16.mxu0 %v1724
    %2269 = vmatpush2.bf16.msra.mxu0 %v1723
    %2270 = vmatprep.subr.bf16.mxu0 %v1720
    %2271 = vmatpush2.bf16.msra.mxu0 %v1719
    %2272 = vmatprep.subr.bf16.mxu0 %v1716
    %2273 = vmatpush2.bf16.msra.mxu0 %v1715
    %2274 = vmatprep.subr.bf16.mxu0 %v1712
    %2275 = vmatpush2.bf16.msra.mxu0 %v1711
    %2276 = vmatprep.subr.bf16.mxu0 %v1708
    %2277 = vmatpush2.bf16.msra.mxu0 %v1707
    %2278 = vmatprep.subr.bf16.mxu0 %v1704
    %2279 = vmatpush2.bf16.msra.mxu0 %v1703
    %2280 = vmatprep.mubr.bf16.mxu0 %v506
    %2281 = vmatmul.mubr.bf16.gmra.mxu0 %v505
    %v2282 = vpop.f32.mrf.mxu0
    %v2283 = vadd.f32 %v2240, %v2282
    %v2284 = vpop.f32.mrf.mxu0
    %v2285 = vadd.f32 %v2242, %v2284
    %v2286 = vpop.f32.mrf.mxu0
    %v2287 = vadd.f32 %v2244, %v2286
    %v2288 = vpop.f32.mrf.mxu0
    %v2289 = vadd.f32 %v2246, %v2288
    %2290 = vdwg.mxu0
    %2291 = vmatprep.subr.bf16.mxu0 %v1764
    %2292 = vmatpush1.bf16.msra.mxu0 %v1763
    %2293 = vmatprep.subr.bf16.mxu0 %v1760
    %2294 = vmatpush1.bf16.msra.mxu0 %v1759
    %2295 = vmatprep.subr.bf16.mxu0 %v1756
    %2296 = vmatpush1.bf16.msra.mxu0 %v1755
    %2297 = vmatprep.subr.bf16.mxu0 %v1752
    %2298 = vmatpush1.bf16.msra.mxu0 %v1751
    %2299 = vmatprep.subr.bf16.mxu0 %v1748
    %2300 = vmatpush1.bf16.msra.mxu0 %v1747
    %2301 = vmatprep.subr.bf16.mxu0 %v1744
    %2302 = vmatpush1.bf16.msra.mxu0 %v1743
    %2303 = vmatprep.subr.bf16.mxu0 %v1740
    %2304 = vmatpush1.bf16.msra.mxu0 %v1739
    %2305 = vmatprep.subr.bf16.mxu0 %v1736
    %2306 = vmatpush1.bf16.msra.mxu0 %v1735
    %2307 = vmatprep.subr.bf16.mxu0 %v1796
    %2308 = vmatpush2.bf16.msra.mxu0 %v1795
    %2309 = vmatprep.subr.bf16.mxu0 %v1792
    %2310 = vmatpush2.bf16.msra.mxu0 %v1791
    %2311 = vmatprep.subr.bf16.mxu0 %v1788
    %2312 = vmatpush2.bf16.msra.mxu0 %v1787
    %2313 = vmatprep.subr.bf16.mxu0 %v1784
    %2314 = vmatpush2.bf16.msra.mxu0 %v1783
    %2315 = vmatprep.subr.bf16.mxu0 %v1780
    %2316 = vmatpush2.bf16.msra.mxu0 %v1779
    %2317 = vmatprep.subr.bf16.mxu0 %v1776
    %2318 = vmatpush2.bf16.msra.mxu0 %v1775
    %2319 = vmatprep.subr.bf16.mxu0 %v1772
    %2320 = vmatpush2.bf16.msra.mxu0 %v1771
    %2321 = vmatprep.subr.bf16.mxu0 %v1768
    %2322 = vmatpush2.bf16.msra.mxu0 %v1767
    %2323 = vmatprep.mubr.bf16.mxu0 %v508
    %2324 = vmatmul.mubr.bf16.gmra.mxu0 %v507
    %v2325 = vpop.f32.mrf.mxu0
    %v2326 = vadd.f32 %v2283, %v2325
    %v2327 = vpop.f32.mrf.mxu0
    %v2328 = vadd.f32 %v2285, %v2327
    %v2329 = vpop.f32.mrf.mxu0
    %v2330 = vadd.f32 %v2287, %v2329
    %v2331 = vpop.f32.mrf.mxu0
    %v2332 = vadd.f32 %v2289, %v2331
    %2333 = vdwg.mxu0
    %2334 = vmatprep.subr.bf16.mxu0 %v1510
    %2335 = vmatpush1.bf16.msra.mxu0 %v1509
    %2336 = vmatprep.subr.bf16.mxu0 %v1506
    %2337 = vmatpush1.bf16.msra.mxu0 %v1505
    %2338 = vmatprep.subr.bf16.mxu0 %v1502
    %2339 = vmatpush1.bf16.msra.mxu0 %v1501
    %2340 = vmatprep.subr.bf16.mxu0 %v1498
    %2341 = vmatpush1.bf16.msra.mxu0 %v1497
    %2342 = vmatprep.subr.bf16.mxu0 %v1494
    %2343 = vmatpush1.bf16.msra.mxu0 %v1493
    %2344 = vmatprep.subr.bf16.mxu0 %v1490
    %2345 = vmatpush1.bf16.msra.mxu0 %v1489
    %2346 = vmatprep.subr.bf16.mxu0 %v1486
    %2347 = vmatpush1.bf16.msra.mxu0 %v1485
    %2348 = vmatprep.subr.bf16.mxu0 %v1482
    %2349 = vmatpush1.bf16.msra.mxu0 %v1481
    %2350 = vmatprep.subr.bf16.mxu0 %v1542
    %2351 = vmatpush2.bf16.msra.mxu0 %v1541
    %2352 = vmatprep.subr.bf16.mxu0 %v1538
    %2353 = vmatpush2.bf16.msra.mxu0 %v1537
    %2354 = vmatprep.subr.bf16.mxu0 %v1534
    %2355 = vmatpush2.bf16.msra.mxu0 %v1533
    %2356 = vmatprep.subr.bf16.mxu0 %v1530
    %2357 = vmatpush2.bf16.msra.mxu0 %v1529
    %2358 = vmatprep.subr.bf16.mxu0 %v1526
    %2359 = vmatpush2.bf16.msra.mxu0 %v1525
    %2360 = vmatprep.subr.bf16.mxu0 %v1522
    %2361 = vmatpush2.bf16.msra.mxu0 %v1521
    %2362 = vmatprep.subr.bf16.mxu0 %v1518
    %2363 = vmatpush2.bf16.msra.mxu0 %v1517
    %2364 = vmatprep.subr.bf16.mxu0 %v1514
    %2365 = vmatpush2.bf16.msra.mxu0 %v1513
    %2366 = vmatprep.mubr.bf16.mxu0 %v500
    %2367 = vmatmul.mubr.bf16.gmra.mxu0 %v499
    %v2368 = vpop.f32.mrf.mxu0
    %v2369 = vadd.f32 %v460, %v2368
    %v2370 = vpop.f32.mrf.mxu0
    %v2371 = vadd.f32 %v464, %v2370
    %v2372 = vpop.f32.mrf.mxu0
    %v2373 = vadd.f32 %v460, %v2372
    %v2374 = vpop.f32.mrf.mxu0
    %v2375 = vadd.f32 %v464, %v2374
    %2376 = vdwg.mxu0
    %2377 = vmatprep.subr.bf16.mxu0 %v1574
    %2378 = vmatpush1.bf16.msra.mxu0 %v1573
    %2379 = vmatprep.subr.bf16.mxu0 %v1570
    %2380 = vmatpush1.bf16.msra.mxu0 %v1569
    %2381 = vmatprep.subr.bf16.mxu0 %v1566
    %2382 = vmatpush1.bf16.msra.mxu0 %v1565
    %2383 = vmatprep.subr.bf16.mxu0 %v1562
    %2384 = vmatpush1.bf16.msra.mxu0 %v1561
    %2385 = vmatprep.subr.bf16.mxu0 %v1558
    %2386 = vmatpush1.bf16.msra.mxu0 %v1557
    %2387 = vmatprep.subr.bf16.mxu0 %v1554
    %2388 = vmatpush1.bf16.msra.mxu0 %v1553
    %2389 = vmatprep.subr.bf16.mxu0 %v1550
    %2390 = vmatpush1.bf16.msra.mxu0 %v1549
    %2391 = vmatprep.subr.bf16.mxu0 %v1546
    %2392 = vmatpush1.bf16.msra.mxu0 %v1545
    %2393 = vmatprep.subr.bf16.mxu0 %v1606
    %2394 = vmatpush2.bf16.msra.mxu0 %v1605
    %2395 = vmatprep.subr.bf16.mxu0 %v1602
    %2396 = vmatpush2.bf16.msra.mxu0 %v1601
    %2397 = vmatprep.subr.bf16.mxu0 %v1598
    %2398 = vmatpush2.bf16.msra.mxu0 %v1597
    %2399 = vmatprep.subr.bf16.mxu0 %v1594
    %2400 = vmatpush2.bf16.msra.mxu0 %v1593
    %2401 = vmatprep.subr.bf16.mxu0 %v1590
    %2402 = vmatpush2.bf16.msra.mxu0 %v1589
    %2403 = vmatprep.subr.bf16.mxu0 %v1586
    %2404 = vmatpush2.bf16.msra.mxu0 %v1585
    %2405 = vmatprep.subr.bf16.mxu0 %v1582
    %2406 = vmatpush2.bf16.msra.mxu0 %v1581
    %2407 = vmatprep.subr.bf16.mxu0 %v1578
    %2408 = vmatpush2.bf16.msra.mxu0 %v1577
    %2409 = vmatprep.mubr.bf16.mxu0 %v502
    %2410 = vmatmul.mubr.bf16.gmra.mxu0 %v501
    %v2411 = vpop.f32.mrf.mxu0
    %v2412 = vadd.f32 %v2369, %v2411
    %v2413 = vpop.f32.mrf.mxu0
    %v2414 = vadd.f32 %v2371, %v2413
    %v2415 = vpop.f32.mrf.mxu0
    %v2416 = vadd.f32 %v2373, %v2415
    %v2417 = vpop.f32.mrf.mxu0
    %v2418 = vadd.f32 %v2375, %v2417
    %2419 = vdwg.mxu0
    %2420 = vmatprep.subr.bf16.mxu0 %v1638
    %2421 = vmatpush1.bf16.msra.mxu0 %v1637
    %2422 = vmatprep.subr.bf16.mxu0 %v1634
    %2423 = vmatpush1.bf16.msra.mxu0 %v1633
    %2424 = vmatprep.subr.bf16.mxu0 %v1630
    %2425 = vmatpush1.bf16.msra.mxu0 %v1629
    %2426 = vmatprep.subr.bf16.mxu0 %v1626
    %2427 = vmatpush1.bf16.msra.mxu0 %v1625
    %2428 = vmatprep.subr.bf16.mxu0 %v1622
    %2429 = vmatpush1.bf16.msra.mxu0 %v1621
    %2430 = vmatprep.subr.bf16.mxu0 %v1618
    %2431 = vmatpush1.bf16.msra.mxu0 %v1617
    %2432 = vmatprep.subr.bf16.mxu0 %v1614
    %2433 = vmatpush1.bf16.msra.mxu0 %v1613
    %2434 = vmatprep.subr.bf16.mxu0 %v1610
    %2435 = vmatpush1.bf16.msra.mxu0 %v1609
    %2436 = vmatprep.subr.bf16.mxu0 %v1670
    %2437 = vmatpush2.bf16.msra.mxu0 %v1669
    %2438 = vmatprep.subr.bf16.mxu0 %v1666
    %2439 = vmatpush2.bf16.msra.mxu0 %v1665
    %2440 = vmatprep.subr.bf16.mxu0 %v1662
    %2441 = vmatpush2.bf16.msra.mxu0 %v1661
    %2442 = vmatprep.subr.bf16.mxu0 %v1658
    %2443 = vmatpush2.bf16.msra.mxu0 %v1657
    %2444 = vmatprep.subr.bf16.mxu0 %v1654
    %2445 = vmatpush2.bf16.msra.mxu0 %v1653
    %2446 = vmatprep.subr.bf16.mxu0 %v1650
    %2447 = vmatpush2.bf16.msra.mxu0 %v1649
    %2448 = vmatprep.subr.bf16.mxu0 %v1646
    %2449 = vmatpush2.bf16.msra.mxu0 %v1645
    %2450 = vmatprep.subr.bf16.mxu0 %v1642
    %2451 = vmatpush2.bf16.msra.mxu0 %v1641
    %2452 = vmatprep.mubr.bf16.mxu0 %v504
    %2453 = vmatmul.mubr.bf16.gmra.mxu0 %v503
    %v2454 = vpop.f32.mrf.mxu0
    %v2455 = vadd.f32 %v2412, %v2454
    %v2456 = vpop.f32.mrf.mxu0
    %v2457 = vadd.f32 %v2414, %v2456
    %v2458 = vpop.f32.mrf.mxu0
    %v2459 = vadd.f32 %v2416, %v2458
    %v2460 = vpop.f32.mrf.mxu0
    %v2461 = vadd.f32 %v2418, %v2460
    %2462 = vdwg.mxu0
    %2463 = vmatprep.subr.bf16.mxu0 %v1702
    %2464 = vmatpush1.bf16.msra.mxu0 %v1701
    %2465 = vmatprep.subr.bf16.mxu0 %v1698
    %2466 = vmatpush1.bf16.msra.mxu0 %v1697
    %2467 = vmatprep.subr.bf16.mxu0 %v1694
    %2468 = vmatpush1.bf16.msra.mxu0 %v1693
    %2469 = vmatprep.subr.bf16.mxu0 %v1690
    %2470 = vmatpush1.bf16.msra.mxu0 %v1689
    %2471 = vmatprep.subr.bf16.mxu0 %v1686
    %2472 = vmatpush1.bf16.msra.mxu0 %v1685
    %2473 = vmatprep.subr.bf16.mxu0 %v1682
    %2474 = vmatpush1.bf16.msra.mxu0 %v1681
    %2475 = vmatprep.subr.bf16.mxu0 %v1678
    %2476 = vmatpush1.bf16.msra.mxu0 %v1677
    %2477 = vmatprep.subr.bf16.mxu0 %v1674
    %2478 = vmatpush1.bf16.msra.mxu0 %v1673
    %2479 = vmatprep.subr.bf16.mxu0 %v1734
    %2480 = vmatpush2.bf16.msra.mxu0 %v1733
    %2481 = vmatprep.subr.bf16.mxu0 %v1730
    %2482 = vmatpush2.bf16.msra.mxu0 %v1729
    %2483 = vmatprep.subr.bf16.mxu0 %v1726
    %2484 = vmatpush2.bf16.msra.mxu0 %v1725
    %2485 = vmatprep.subr.bf16.mxu0 %v1722
    %2486 = vmatpush2.bf16.msra.mxu0 %v1721
    %2487 = vmatprep.subr.bf16.mxu0 %v1718
    %2488 = vmatpush2.bf16.msra.mxu0 %v1717
    %2489 = vmatprep.subr.bf16.mxu0 %v1714
    %2490 = vmatpush2.bf16.msra.mxu0 %v1713
    %2491 = vmatprep.subr.bf16.mxu0 %v1710
    %2492 = vmatpush2.bf16.msra.mxu0 %v1709
    %2493 = vmatprep.subr.bf16.mxu0 %v1706
    %2494 = vmatpush2.bf16.msra.mxu0 %v1705
    %2495 = vmatprep.mubr.bf16.mxu0 %v506
    %2496 = vmatmul.mubr.bf16.gmra.mxu0 %v505
    %v2497 = vpop.f32.mrf.mxu0
    %v2498 = vadd.f32 %v2455, %v2497
    %v2499 = vpop.f32.mrf.mxu0
    %v2500 = vadd.f32 %v2457, %v2499
    %v2501 = vpop.f32.mrf.mxu0
    %v2502 = vadd.f32 %v2459, %v2501
    %v2503 = vpop.f32.mrf.mxu0
    %v2504 = vadd.f32 %v2461, %v2503
    %2505 = vdwg.mxu0
    %2506 = vmatprep.subr.bf16.mxu0 %v1766
    %2507 = vmatpush1.bf16.msra.mxu0 %v1765
    %2508 = vmatprep.subr.bf16.mxu0 %v1762
    %2509 = vmatpush1.bf16.msra.mxu0 %v1761
    %2510 = vmatprep.subr.bf16.mxu0 %v1758
    %2511 = vmatpush1.bf16.msra.mxu0 %v1757
    %2512 = vmatprep.subr.bf16.mxu0 %v1754
    %2513 = vmatpush1.bf16.msra.mxu0 %v1753
    %2514 = vmatprep.subr.bf16.mxu0 %v1750
    %2515 = vmatpush1.bf16.msra.mxu0 %v1749
    %2516 = vmatprep.subr.bf16.mxu0 %v1746
    %2517 = vmatpush1.bf16.msra.mxu0 %v1745
    %2518 = vmatprep.subr.bf16.mxu0 %v1742
    %2519 = vmatpush1.bf16.msra.mxu0 %v1741
    %2520 = vmatprep.subr.bf16.mxu0 %v1738
    %2521 = vmatpush1.bf16.msra.mxu0 %v1737
    %2522 = vmatprep.subr.bf16.mxu0 %v1798
    %2523 = vmatpush2.bf16.msra.mxu0 %v1797
    %2524 = vmatprep.subr.bf16.mxu0 %v1794
    %2525 = vmatpush2.bf16.msra.mxu0 %v1793
    %2526 = vmatprep.subr.bf16.mxu0 %v1790
    %2527 = vmatpush2.bf16.msra.mxu0 %v1789
    %2528 = vmatprep.subr.bf16.mxu0 %v1786
    %2529 = vmatpush2.bf16.msra.mxu0 %v1785
    %2530 = vmatprep.subr.bf16.mxu0 %v1782
    %2531 = vmatpush2.bf16.msra.mxu0 %v1781
    %2532 = vmatprep.subr.bf16.mxu0 %v1778
    %2533 = vmatpush2.bf16.msra.mxu0 %v1777
    %2534 = vmatprep.subr.bf16.mxu0 %v1774
    %2535 = vmatpush2.bf16.msra.mxu0 %v1773
    %2536 = vmatprep.subr.bf16.mxu0 %v1770
    %2537 = vmatpush2.bf16.msra.mxu0 %v1769
    %2538 = vmatprep.mubr.bf16.mxu0 %v508
    %2539 = vmatmul.mubr.bf16.gmra.mxu0 %v507
    %v2540 = vpop.f32.mrf.mxu0
    %v2541 = vadd.f32 %v2498, %v2540
    %v2542 = vpop.f32.mrf.mxu0
    %v2543 = vadd.f32 %v2500, %v2542
    %v2544 = vpop.f32.mrf.mxu0
    %v2545 = vadd.f32 %v2502, %v2544
    %v2546 = vpop.f32.mrf.mxu0
    %v2547 = vadd.f32 %v2504, %v2546
    %2548 = vdwg.mxu0
    %v2549 = vmax.f32 %v2326, 0.0
    %v2550 = vmax.f32 %v2328, 0.0
    %v2551 = vmax.f32 %v2541, 0.0
    %v2552 = vmax.f32 %v2543, 0.0
    %v2553 = vmax.f32 %v2330, 0.0
    %v2554 = vmax.f32 %v2332, 0.0
    %v2555 = vmax.f32 %v2545, 0.0
    %v2556 = vmax.f32 %v2547, 0.0
    %v2557 = vpack.c.bf16 %v2553, %v2549
    %v2558 = vpack.c.bf16 %v2554, %v2550
    %v2559 = vpack.c.bf16 %v2555, %v2551
    %v2560 = vpack.c.bf16 %v2556, %v2552
    %v2561 = vld [vmem:[#allocation8] sm:$0xff]
    %v2562 = vld [vmem:[#allocation8 + $0x8] sm:$0xff]
    %v2563 = vld [vmem:[#allocation8 + $0x10] sm:$0xff]
    %v2564 = vld [vmem:[#allocation8 + $0x18] sm:$0xff]
    %v2565 = vld [vmem:[#allocation8 + $0x20] sm:$0xff]
    %v2566 = vld [vmem:[#allocation8 + $0x28] sm:$0xff]
    %v2567 = vld [vmem:[#allocation8 + $0x30] sm:$0xff]
    %v2568 = vld [vmem:[#allocation8 + $0x38] sm:$0xff]
    %v2569 = vld [vmem:[#allocation8 + $0x40] sm:$0xff]
    %v2570 = vld [vmem:[#allocation8 + $0x48] sm:$0xff]
    %v2571 = vld [vmem:[#allocation8 + $0x50] sm:$0xff]
    %v2572 = vld [vmem:[#allocation8 + $0x58] sm:$0xff]
    %v2573 = vld [vmem:[#allocation8 + $0x60] sm:$0xff]
    %v2574 = vld [vmem:[#allocation8 + $0x68] sm:$0xff]
    %v2575 = vld [vmem:[#allocation8 + $0x70] sm:$0xff]
    %v2576 = vld [vmem:[#allocation8 + $0x78] sm:$0xff]
    %v2577 = vld [vmem:[#allocation8 + $0x80] sm:$0xff]
    %v2578 = vld [vmem:[#allocation8 + $0x88] sm:$0xff]
    %v2579 = vld [vmem:[#allocation8 + $0x90] sm:$0xff]
    %v2580 = vld [vmem:[#allocation8 + $0x98] sm:$0xff]
    %v2581 = vld [vmem:[#allocation8 + $0xa0] sm:$0xff]
    %v2582 = vld [vmem:[#allocation8 + $0xa8] sm:$0xff]
    %v2583 = vld [vmem:[#allocation8 + $0xb0] sm:$0xff]
    %v2584 = vld [vmem:[#allocation8 + $0xb8] sm:$0xff]
    %v2585 = vld [vmem:[#allocation8 + $0xc0] sm:$0xff]
    %v2586 = vld [vmem:[#allocation8 + $0xc8] sm:$0xff]
    %v2587 = vld [vmem:[#allocation8 + $0xd0] sm:$0xff]
    %v2588 = vld [vmem:[#allocation8 + $0xd8] sm:$0xff]
    %v2589 = vld [vmem:[#allocation8 + $0xe0] sm:$0xff]
    %v2590 = vld [vmem:[#allocation8 + $0xe8] sm:$0xff]
    %v2591 = vld [vmem:[#allocation8 + $0xf0] sm:$0xff]
    %v2592 = vld [vmem:[#allocation8 + $0xf8] sm:$0xff]
    %v2593 = vld [vmem:[#allocation8 + $0x100] sm:$0xff]
    %v2594 = vld [vmem:[#allocation8 + $0x108] sm:$0xff]
    %v2595 = vld [vmem:[#allocation8 + $0x110] sm:$0xff]
    %v2596 = vld [vmem:[#allocation8 + $0x118] sm:$0xff]
    %v2597 = vld [vmem:[#allocation8 + $0x120] sm:$0xff]
    %v2598 = vld [vmem:[#allocation8 + $0x128] sm:$0xff]
    %v2599 = vld [vmem:[#allocation8 + $0x130] sm:$0xff]
    %v2600 = vld [vmem:[#allocation8 + $0x138] sm:$0xff]
    %v2601 = vld [vmem:[#allocation8 + $0x140] sm:$0xff]
    %v2602 = vld [vmem:[#allocation8 + $0x148] sm:$0xff]
    %v2603 = vld [vmem:[#allocation8 + $0x150] sm:$0xff]
    %v2604 = vld [vmem:[#allocation8 + $0x158] sm:$0xff]
    %v2605 = vld [vmem:[#allocation8 + $0x160] sm:$0xff]
    %v2606 = vld [vmem:[#allocation8 + $0x168] sm:$0xff]
    %v2607 = vld [vmem:[#allocation8 + $0x170] sm:$0xff]
    %v2608 = vld [vmem:[#allocation8 + $0x178] sm:$0xff]
    %v2609 = vld [vmem:[#allocation8 + $0x180] sm:$0xff]
    %v2610 = vld [vmem:[#allocation8 + $0x188] sm:$0xff]
    %v2611 = vld [vmem:[#allocation8 + $0x190] sm:$0xff]
    %v2612 = vld [vmem:[#allocation8 + $0x198] sm:$0xff]
    %v2613 = vld [vmem:[#allocation8 + $0x1a0] sm:$0xff]
    %v2614 = vld [vmem:[#allocation8 + $0x1a8] sm:$0xff]
    %v2615 = vld [vmem:[#allocation8 + $0x1b0] sm:$0xff]
    %v2616 = vld [vmem:[#allocation8 + $0x1b8] sm:$0xff]
    %v2617 = vld [vmem:[#allocation8 + $0x1c0] sm:$0xff]
    %v2618 = vld [vmem:[#allocation8 + $0x1c8] sm:$0xff]
    %v2619 = vld [vmem:[#allocation8 + $0x1d0] sm:$0xff]
    %v2620 = vld [vmem:[#allocation8 + $0x1d8] sm:$0xff]
    %v2621 = vld [vmem:[#allocation8 + $0x1e0] sm:$0xff]
    %v2622 = vld [vmem:[#allocation8 + $0x1e8] sm:$0xff]
    %v2623 = vld [vmem:[#allocation8 + $0x1f0] sm:$0xff]
    %v2624 = vld [vmem:[#allocation8 + $0x1f8] sm:$0xff]
    %v2625 = vld [vmem:[#allocation10] sm:$0x3]
    %v2627 = vlaneseq
    %v2628 = vshrl.u32 %v2627, 7
    %v2629 = vsub.s32 0, %v2628
    %v2630 = vrot.slane %v2625, %v2629
    %v2631 = vlaneseq
    %v2632 = vshrl.u32 %v2631, 7
    %v2633 = vsub.s32 1, %v2632
    %v2634 = vrot.slane %v2625, %v2633
    %v2701 = vunpack.c.l.b16 %v2561
    %v2702 = vunpack.c.h.b16 %v2561
    %v2703 = vunpack.c.l.b16 %v2562
    %v2704 = vunpack.c.h.b16 %v2562
    %v2705 = vunpack.c.l.b16 %v2563
    %v2706 = vunpack.c.h.b16 %v2563
    %v2707 = vunpack.c.l.b16 %v2564
    %v2708 = vunpack.c.h.b16 %v2564
    %v2709 = vunpack.c.l.b16 %v2565
    %v2710 = vunpack.c.h.b16 %v2565
    %v2711 = vunpack.c.l.b16 %v2566
    %v2712 = vunpack.c.h.b16 %v2566
    %v2713 = vunpack.c.l.b16 %v2567
    %v2714 = vunpack.c.h.b16 %v2567
    %v2715 = vunpack.c.l.b16 %v2568
    %v2716 = vunpack.c.h.b16 %v2568
    %v2717 = vunpack.c.l.b16 %v2569
    %v2718 = vunpack.c.h.b16 %v2569
    %v2719 = vunpack.c.l.b16 %v2570
    %v2720 = vunpack.c.h.b16 %v2570
    %v2721 = vunpack.c.l.b16 %v2571
    %v2722 = vunpack.c.h.b16 %v2571
    %v2723 = vunpack.c.l.b16 %v2572
    %v2724 = vunpack.c.h.b16 %v2572
    %v2725 = vunpack.c.l.b16 %v2573
    %v2726 = vunpack.c.h.b16 %v2573
    %v2727 = vunpack.c.l.b16 %v2574
    %v2728 = vunpack.c.h.b16 %v2574
    %v2729 = vunpack.c.l.b16 %v2575
    %v2730 = vunpack.c.h.b16 %v2575
    %v2731 = vunpack.c.l.b16 %v2576
    %v2732 = vunpack.c.h.b16 %v2576
    %v2733 = vunpack.c.l.b16 %v2577
    %v2734 = vunpack.c.h.b16 %v2577
    %v2735 = vunpack.c.l.b16 %v2578
    %v2736 = vunpack.c.h.b16 %v2578
    %v2737 = vunpack.c.l.b16 %v2579
    %v2738 = vunpack.c.h.b16 %v2579
    %v2739 = vunpack.c.l.b16 %v2580
    %v2740 = vunpack.c.h.b16 %v2580
    %v2741 = vunpack.c.l.b16 %v2581
    %v2742 = vunpack.c.h.b16 %v2581
    %v2743 = vunpack.c.l.b16 %v2582
    %v2744 = vunpack.c.h.b16 %v2582
    %v2745 = vunpack.c.l.b16 %v2583
    %v2746 = vunpack.c.h.b16 %v2583
    %v2747 = vunpack.c.l.b16 %v2584
    %v2748 = vunpack.c.h.b16 %v2584
    %v2749 = vunpack.c.l.b16 %v2585
    %v2750 = vunpack.c.h.b16 %v2585
    %v2751 = vunpack.c.l.b16 %v2586
    %v2752 = vunpack.c.h.b16 %v2586
    %v2753 = vunpack.c.l.b16 %v2587
    %v2754 = vunpack.c.h.b16 %v2587
    %v2755 = vunpack.c.l.b16 %v2588
    %v2756 = vunpack.c.h.b16 %v2588
    %v2757 = vunpack.c.l.b16 %v2589
    %v2758 = vunpack.c.h.b16 %v2589
    %v2759 = vunpack.c.l.b16 %v2590
    %v2760 = vunpack.c.h.b16 %v2590
    %v2761 = vunpack.c.l.b16 %v2591
    %v2762 = vunpack.c.h.b16 %v2591
    %v2763 = vunpack.c.l.b16 %v2592
    %v2764 = vunpack.c.h.b16 %v2592
    %v2765 = vunpack.c.l.b16 %v2593
    %v2766 = vunpack.c.h.b16 %v2593
    %v2767 = vunpack.c.l.b16 %v2594
    %v2768 = vunpack.c.h.b16 %v2594
    %v2769 = vunpack.c.l.b16 %v2595
    %v2770 = vunpack.c.h.b16 %v2595
    %v2771 = vunpack.c.l.b16 %v2596
    %v2772 = vunpack.c.h.b16 %v2596
    %v2773 = vunpack.c.l.b16 %v2597
    %v2774 = vunpack.c.h.b16 %v2597
    %v2775 = vunpack.c.l.b16 %v2598
    %v2776 = vunpack.c.h.b16 %v2598
    %v2777 = vunpack.c.l.b16 %v2599
    %v2778 = vunpack.c.h.b16 %v2599
    %v2779 = vunpack.c.l.b16 %v2600
    %v2780 = vunpack.c.h.b16 %v2600
    %v2781 = vunpack.c.l.b16 %v2601
    %v2782 = vunpack.c.h.b16 %v2601
    %v2783 = vunpack.c.l.b16 %v2602
    %v2784 = vunpack.c.h.b16 %v2602
    %v2785 = vunpack.c.l.b16 %v2603
    %v2786 = vunpack.c.h.b16 %v2603
    %v2787 = vunpack.c.l.b16 %v2604
    %v2788 = vunpack.c.h.b16 %v2604
    %v2789 = vunpack.c.l.b16 %v2605
    %v2790 = vunpack.c.h.b16 %v2605
    %v2791 = vunpack.c.l.b16 %v2606
    %v2792 = vunpack.c.h.b16 %v2606
    %v2793 = vunpack.c.l.b16 %v2607
    %v2794 = vunpack.c.h.b16 %v2607
    %v2795 = vunpack.c.l.b16 %v2608
    %v2796 = vunpack.c.h.b16 %v2608
    %v2797 = vunpack.c.l.b16 %v2609
    %v2798 = vunpack.c.h.b16 %v2609
    %v2799 = vunpack.c.l.b16 %v2610
    %v2800 = vunpack.c.h.b16 %v2610
    %v2801 = vunpack.c.l.b16 %v2611
    %v2802 = vunpack.c.h.b16 %v2611
    %v2803 = vunpack.c.l.b16 %v2612
    %v2804 = vunpack.c.h.b16 %v2612
    %v2805 = vunpack.c.l.b16 %v2613
    %v2806 = vunpack.c.h.b16 %v2613
    %v2807 = vunpack.c.l.b16 %v2614
    %v2808 = vunpack.c.h.b16 %v2614
    %v2809 = vunpack.c.l.b16 %v2615
    %v2810 = vunpack.c.h.b16 %v2615
    %v2811 = vunpack.c.l.b16 %v2616
    %v2812 = vunpack.c.h.b16 %v2616
    %v2813 = vunpack.c.l.b16 %v2617
    %v2814 = vunpack.c.h.b16 %v2617
    %v2815 = vunpack.c.l.b16 %v2618
    %v2816 = vunpack.c.h.b16 %v2618
    %v2817 = vunpack.c.l.b16 %v2619
    %v2818 = vunpack.c.h.b16 %v2619
    %v2819 = vunpack.c.l.b16 %v2620
    %v2820 = vunpack.c.h.b16 %v2620
    %v2821 = vunpack.c.l.b16 %v2621
    %v2822 = vunpack.c.h.b16 %v2621
    %v2823 = vunpack.c.l.b16 %v2622
    %v2824 = vunpack.c.h.b16 %v2622
    %v2825 = vunpack.c.l.b16 %v2623
    %v2826 = vunpack.c.h.b16 %v2623
    %v2827 = vunpack.c.l.b16 %v2624
    %v2828 = vunpack.c.h.b16 %v2624
    %v2829 = vpack.c.b16 %v2703, %v2701
    %v2830 = vpack.c.b16 %v2704, %v2702
    %v2831 = vpack.c.b16 %v2707, %v2705
    %v2832 = vpack.c.b16 %v2708, %v2706
    %v2833 = vpack.c.b16 %v2711, %v2709
    %v2834 = vpack.c.b16 %v2712, %v2710
    %v2835 = vpack.c.b16 %v2715, %v2713
    %v2836 = vpack.c.b16 %v2716, %v2714
    %v2837 = vpack.c.b16 %v2719, %v2717
    %v2838 = vpack.c.b16 %v2720, %v2718
    %v2839 = vpack.c.b16 %v2723, %v2721
    %v2840 = vpack.c.b16 %v2724, %v2722
    %v2841 = vpack.c.b16 %v2727, %v2725
    %v2842 = vpack.c.b16 %v2728, %v2726
    %v2843 = vpack.c.b16 %v2731, %v2729
    %v2844 = vpack.c.b16 %v2732, %v2730
    %v2845 = vpack.c.b16 %v2735, %v2733
    %v2846 = vpack.c.b16 %v2736, %v2734
    %v2847 = vpack.c.b16 %v2739, %v2737
    %v2848 = vpack.c.b16 %v2740, %v2738
    %v2849 = vpack.c.b16 %v2743, %v2741
    %v2850 = vpack.c.b16 %v2744, %v2742
    %v2851 = vpack.c.b16 %v2747, %v2745
    %v2852 = vpack.c.b16 %v2748, %v2746
    %v2853 = vpack.c.b16 %v2751, %v2749
    %v2854 = vpack.c.b16 %v2752, %v2750
    %v2855 = vpack.c.b16 %v2755, %v2753
    %v2856 = vpack.c.b16 %v2756, %v2754
    %v2857 = vpack.c.b16 %v2759, %v2757
    %v2858 = vpack.c.b16 %v2760, %v2758
    %v2859 = vpack.c.b16 %v2763, %v2761
    %v2860 = vpack.c.b16 %v2764, %v2762
    %v2861 = vpack.c.b16 %v2767, %v2765
    %v2862 = vpack.c.b16 %v2768, %v2766
    %v2863 = vpack.c.b16 %v2771, %v2769
    %v2864 = vpack.c.b16 %v2772, %v2770
    %v2865 = vpack.c.b16 %v2775, %v2773
    %v2866 = vpack.c.b16 %v2776, %v2774
    %v2867 = vpack.c.b16 %v2779, %v2777
    %v2868 = vpack.c.b16 %v2780, %v2778
    %v2869 = vpack.c.b16 %v2783, %v2781
    %v2870 = vpack.c.b16 %v2784, %v2782
    %v2871 = vpack.c.b16 %v2787, %v2785
    %v2872 = vpack.c.b16 %v2788, %v2786
    %v2873 = vpack.c.b16 %v2791, %v2789
    %v2874 = vpack.c.b16 %v2792, %v2790
    %v2875 = vpack.c.b16 %v2795, %v2793
    %v2876 = vpack.c.b16 %v2796, %v2794
    %v2877 = vpack.c.b16 %v2799, %v2797
    %v2878 = vpack.c.b16 %v2800, %v2798
    %v2879 = vpack.c.b16 %v2803, %v2801
    %v2880 = vpack.c.b16 %v2804, %v2802
    %v2881 = vpack.c.b16 %v2807, %v2805
    %v2882 = vpack.c.b16 %v2808, %v2806
    %v2883 = vpack.c.b16 %v2811, %v2809
    %v2884 = vpack.c.b16 %v2812, %v2810
    %v2885 = vpack.c.b16 %v2815, %v2813
    %v2886 = vpack.c.b16 %v2816, %v2814
    %v2887 = vpack.c.b16 %v2819, %v2817
    %v2888 = vpack.c.b16 %v2820, %v2818
    %v2889 = vpack.c.b16 %v2823, %v2821
    %v2890 = vpack.c.b16 %v2824, %v2822
    %v2891 = vpack.c.b16 %v2827, %v2825
    %v2892 = vpack.c.b16 %v2828, %v2826
    %2957 = vmatprep.subr.bf16.mxu0 %v2844
    %2958 = vmatpush1.bf16.msra.mxu0 %v2843
    %2959 = vmatprep.subr.bf16.mxu0 %v2842
    %2960 = vmatpush1.bf16.msra.mxu0 %v2841
    %2961 = vmatprep.subr.bf16.mxu0 %v2840
    %2962 = vmatpush1.bf16.msra.mxu0 %v2839
    %2963 = vmatprep.subr.bf16.mxu0 %v2838
    %2964 = vmatpush1.bf16.msra.mxu0 %v2837
    %2965 = vmatprep.subr.bf16.mxu0 %v2836
    %2966 = vmatpush1.bf16.msra.mxu0 %v2835
    %2967 = vmatprep.subr.bf16.mxu0 %v2834
    %2968 = vmatpush1.bf16.msra.mxu0 %v2833
    %2969 = vmatprep.subr.bf16.mxu0 %v2832
    %2970 = vmatpush1.bf16.msra.mxu0 %v2831
    %2971 = vmatprep.subr.bf16.mxu0 %v2830
    %2972 = vmatpush1.bf16.msra.mxu0 %v2829
    %2973 = vmatprep.subr.bf16.mxu0 %v2860
    %2974 = vmatpush2.bf16.msra.mxu0 %v2859
    %2975 = vmatprep.subr.bf16.mxu0 %v2858
    %2976 = vmatpush2.bf16.msra.mxu0 %v2857
    %2977 = vmatprep.subr.bf16.mxu0 %v2856
    %2978 = vmatpush2.bf16.msra.mxu0 %v2855
    %2979 = vmatprep.subr.bf16.mxu0 %v2854
    %2980 = vmatpush2.bf16.msra.mxu0 %v2853
    %2981 = vmatprep.subr.bf16.mxu0 %v2852
    %2982 = vmatpush2.bf16.msra.mxu0 %v2851
    %2983 = vmatprep.subr.bf16.mxu0 %v2850
    %2984 = vmatpush2.bf16.msra.mxu0 %v2849
    %2985 = vmatprep.subr.bf16.mxu0 %v2848
    %2986 = vmatpush2.bf16.msra.mxu0 %v2847
    %2987 = vmatprep.subr.bf16.mxu0 %v2846
    %2988 = vmatpush2.bf16.msra.mxu0 %v2845
    %2989 = vmatprep.mubr.bf16.mxu0 %v2558
    %2990 = vmatmul.mubr.bf16.gmra.mxu0 %v2557
    %v2991 = vpop.f32.mrf.mxu0
    %v2992 = vadd.f32 %v2630, %v2991
    %v2993 = vpop.f32.mrf.mxu0
    %v2994 = vadd.f32 %v2634, %v2993
    %v2995 = vpop.f32.mrf.mxu0
    %v2996 = vadd.f32 %v2630, %v2995
    %v2997 = vpop.f32.mrf.mxu0
    %v2998 = vadd.f32 %v2634, %v2997
    %2999 = vdwg.mxu0
    %3000 = vmatprep.subr.bf16.mxu0 %v2876
    %3001 = vmatpush1.bf16.msra.mxu0 %v2875
    %3002 = vmatprep.subr.bf16.mxu0 %v2874
    %3003 = vmatpush1.bf16.msra.mxu0 %v2873
    %3004 = vmatprep.subr.bf16.mxu0 %v2872
    %3005 = vmatpush1.bf16.msra.mxu0 %v2871
    %3006 = vmatprep.subr.bf16.mxu0 %v2870
    %3007 = vmatpush1.bf16.msra.mxu0 %v2869
    %3008 = vmatprep.subr.bf16.mxu0 %v2868
    %3009 = vmatpush1.bf16.msra.mxu0 %v2867
    %3010 = vmatprep.subr.bf16.mxu0 %v2866
    %3011 = vmatpush1.bf16.msra.mxu0 %v2865
    %3012 = vmatprep.subr.bf16.mxu0 %v2864
    %3013 = vmatpush1.bf16.msra.mxu0 %v2863
    %3014 = vmatprep.subr.bf16.mxu0 %v2862
    %3015 = vmatpush1.bf16.msra.mxu0 %v2861
    %3016 = vmatprep.subr.bf16.mxu0 %v2892
    %3017 = vmatpush2.bf16.msra.mxu0 %v2891
    %3018 = vmatprep.subr.bf16.mxu0 %v2890
    %3019 = vmatpush2.bf16.msra.mxu0 %v2889
    %3020 = vmatprep.subr.bf16.mxu0 %v2888
    %3021 = vmatpush2.bf16.msra.mxu0 %v2887
    %3022 = vmatprep.subr.bf16.mxu0 %v2886
    %3023 = vmatpush2.bf16.msra.mxu0 %v2885
    %3024 = vmatprep.subr.bf16.mxu0 %v2884
    %3025 = vmatpush2.bf16.msra.mxu0 %v2883
    %3026 = vmatprep.subr.bf16.mxu0 %v2882
    %3027 = vmatpush2.bf16.msra.mxu0 %v2881
    %3028 = vmatprep.subr.bf16.mxu0 %v2880
    %3029 = vmatpush2.bf16.msra.mxu0 %v2879
    %3030 = vmatprep.subr.bf16.mxu0 %v2878
    %3031 = vmatpush2.bf16.msra.mxu0 %v2877
    %3032 = vmatprep.mubr.bf16.mxu0 %v2560
    %3033 = vmatmul.mubr.bf16.gmra.mxu0 %v2559
    %v3034 = vpop.f32.mrf.mxu0
    %v3035 = vadd.f32 %v2992, %v3034
    %v3036 = vpop.f32.mrf.mxu0
    %v3037 = vadd.f32 %v2994, %v3036
    %v3038 = vpop.f32.mrf.mxu0
    %v3039 = vadd.f32 %v2996, %v3038
    %v3040 = vpop.f32.mrf.mxu0
    %v3041 = vadd.f32 %v2998, %v3040
    %3042 = vdwg.mxu0
    %v3043 = vmax.f32 %v3035, 0.0
    %v3044 = vmax.f32 %v3037, 0.0
    %v3045 = vmax.f32 %v3039, 0.0
    %v3046 = vmax.f32 %v3041, 0.0
    %v3047 = vpack.c.bf16 %v3045, %v3043
    %v3048 = vpack.c.bf16 %v3046, %v3044
    %v3049 = vld [vmem:[#allocation11] sm:$0xf]
    %v3050 = vld [vmem:[#allocation11 + $0x4] sm:$0xf]
    %v3051 = vld [vmem:[#allocation11 + $0x8] sm:$0xf]
    %v3052 = vld [vmem:[#allocation11 + $0xc] sm:$0xf]
    %v3053 = vld [vmem:[#allocation11 + $0x10] sm:$0xf]
    %v3054 = vld [vmem:[#allocation11 + $0x14] sm:$0xf]
    %v3055 = vld [vmem:[#allocation11 + $0x18] sm:$0xf]
    %v3056 = vld [vmem:[#allocation11 + $0x1c] sm:$0xf]
    %v3057 = vld [vmem:[#allocation11 + $0x20] sm:$0xf]
    %v3058 = vld [vmem:[#allocation11 + $0x24] sm:$0xf]
    %v3059 = vld [vmem:[#allocation11 + $0x28] sm:$0xf]
    %v3060 = vld [vmem:[#allocation11 + $0x2c] sm:$0xf]
    %v3061 = vld [vmem:[#allocation11 + $0x30] sm:$0xf]
    %v3062 = vld [vmem:[#allocation11 + $0x34] sm:$0xf]
    %v3063 = vld [vmem:[#allocation11 + $0x38] sm:$0xf]
    %v3064 = vld [vmem:[#allocation11 + $0x3c] sm:$0xf]
    %v3065 = vld [vmem:[#allocation11 + $0x40] sm:$0xf]
    %v3066 = vld [vmem:[#allocation11 + $0x44] sm:$0xf]
    %v3067 = vld [vmem:[#allocation11 + $0x48] sm:$0xf]
    %v3068 = vld [vmem:[#allocation11 + $0x4c] sm:$0xf]
    %v3069 = vld [vmem:[#allocation11 + $0x50] sm:$0xf]
    %v3070 = vld [vmem:[#allocation11 + $0x54] sm:$0xf]
    %v3071 = vld [vmem:[#allocation11 + $0x58] sm:$0xf]
    %v3072 = vld [vmem:[#allocation11 + $0x5c] sm:$0xf]
    %v3073 = vld [vmem:[#allocation11 + $0x60] sm:$0xf]
    %v3074 = vld [vmem:[#allocation11 + $0x64] sm:$0xf]
    %v3075 = vld [vmem:[#allocation11 + $0x68] sm:$0xf]
    %v3076 = vld [vmem:[#allocation11 + $0x6c] sm:$0xf]
    %v3077 = vld [vmem:[#allocation11 + $0x70] sm:$0xf]
    %v3078 = vld [vmem:[#allocation11 + $0x74] sm:$0xf]
    %v3079 = vld [vmem:[#allocation11 + $0x78] sm:$0xf]
    %v3080 = vld [vmem:[#allocation11 + $0x7c] sm:$0xf]
    %v3081 = vld [vmem:[#allocation13] sm:$0x1]
    %v3083 = vlaneseq
    %v3084 = vshrl.u32 %v3083, 7
    %v3085 = vsub.s32 0, %v3084
    %v3086 = vrot.slane %v3081, %v3085
    %v3120 = vunpack.c.l.b16 %v3049
    %v3121 = vunpack.c.l.b16 %v3050
    %v3122 = vunpack.c.l.b16 %v3051
    %v3123 = vunpack.c.l.b16 %v3052
    %v3124 = vunpack.c.l.b16 %v3053
    %v3125 = vunpack.c.l.b16 %v3054
    %v3126 = vunpack.c.l.b16 %v3055
    %v3127 = vunpack.c.l.b16 %v3056
    %v3128 = vunpack.c.l.b16 %v3057
    %v3129 = vunpack.c.l.b16 %v3058
    %v3130 = vunpack.c.l.b16 %v3059
    %v3131 = vunpack.c.l.b16 %v3060
    %v3132 = vunpack.c.l.b16 %v3061
    %v3133 = vunpack.c.l.b16 %v3062
    %v3134 = vunpack.c.l.b16 %v3063
    %v3135 = vunpack.c.l.b16 %v3064
    %v3136 = vunpack.c.l.b16 %v3065
    %v3137 = vunpack.c.l.b16 %v3066
    %v3138 = vunpack.c.l.b16 %v3067
    %v3139 = vunpack.c.l.b16 %v3068
    %v3140 = vunpack.c.l.b16 %v3069
    %v3141 = vunpack.c.l.b16 %v3070
    %v3142 = vunpack.c.l.b16 %v3071
    %v3143 = vunpack.c.l.b16 %v3072
    %v3144 = vunpack.c.l.b16 %v3073
    %v3145 = vunpack.c.l.b16 %v3074
    %v3146 = vunpack.c.l.b16 %v3075
    %v3147 = vunpack.c.l.b16 %v3076
    %v3148 = vunpack.c.l.b16 %v3077
    %v3149 = vunpack.c.l.b16 %v3078
    %v3150 = vunpack.c.l.b16 %v3079
    %v3151 = vunpack.c.l.b16 %v3080
    %v3152 = vpack.c.b16 %v3121, %v3120
    %v3153 = vpack.c.b16 %v3123, %v3122
    %v3154 = vpack.c.b16 %v3125, %v3124
    %v3155 = vpack.c.b16 %v3127, %v3126
    %v3156 = vpack.c.b16 %v3129, %v3128
    %v3157 = vpack.c.b16 %v3131, %v3130
    %v3158 = vpack.c.b16 %v3133, %v3132
    %v3159 = vpack.c.b16 %v3135, %v3134
    %v3160 = vpack.c.b16 %v3137, %v3136
    %v3161 = vpack.c.b16 %v3139, %v3138
    %v3162 = vpack.c.b16 %v3141, %v3140
    %v3163 = vpack.c.b16 %v3143, %v3142
    %v3164 = vpack.c.b16 %v3145, %v3144
    %v3165 = vpack.c.b16 %v3147, %v3146
    %v3166 = vpack.c.b16 %v3149, %v3148
    %v3167 = vpack.c.b16 %v3151, %v3150
    %3184 = vmatprep.subr.bf16.mxu0 0
    %3185 = vmatpush1.bf16.msra.mxu0 %v3159
    %3186 = vmatprep.subr.bf16.mxu0 0
    %3187 = vmatpush1.bf16.msra.mxu0 %v3158
    %3188 = vmatprep.subr.bf16.mxu0 0
    %3189 = vmatpush1.bf16.msra.mxu0 %v3157
    %3190 = vmatprep.subr.bf16.mxu0 0
    %3191 = vmatpush1.bf16.msra.mxu0 %v3156
    %3192 = vmatprep.subr.bf16.mxu0 0
    %3193 = vmatpush1.bf16.msra.mxu0 %v3155
    %3194 = vmatprep.subr.bf16.mxu0 0
    %3195 = vmatpush1.bf16.msra.mxu0 %v3154
    %3196 = vmatprep.subr.bf16.mxu0 0
    %3197 = vmatpush1.bf16.msra.mxu0 %v3153
    %3198 = vmatprep.subr.bf16.mxu0 0
    %3199 = vmatpush1.bf16.msra.mxu0 %v3152
    %3200 = vmatprep.subr.bf16.mxu0 0
    %3201 = vmatpush2.bf16.msra.mxu0 %v3167
    %3202 = vmatprep.subr.bf16.mxu0 0
    %3203 = vmatpush2.bf16.msra.mxu0 %v3166
    %3204 = vmatprep.subr.bf16.mxu0 0
    %3205 = vmatpush2.bf16.msra.mxu0 %v3165
    %3206 = vmatprep.subr.bf16.mxu0 0
    %3207 = vmatpush2.bf16.msra.mxu0 %v3164
    %3208 = vmatprep.subr.bf16.mxu0 0
    %3209 = vmatpush2.bf16.msra.mxu0 %v3163
    %3210 = vmatprep.subr.bf16.mxu0 0
    %3211 = vmatpush2.bf16.msra.mxu0 %v3162
    %3212 = vmatprep.subr.bf16.mxu0 0
    %3213 = vmatpush2.bf16.msra.mxu0 %v3161
    %3214 = vmatprep.subr.bf16.mxu0 0
    %3215 = vmatpush2.bf16.msra.mxu0 %v3160
    %3216 = vmatprep.mubr.bf16.mxu0 %v3048
    %3217 = vmatmul.mubr.bf16.gmra.mxu0 %v3047
    %v3218 = vpop.f32.mrf.mxu0
    %v3219 = vadd.f32 %v3086, %v3218
    %v3220 = vpop.f32.mrf.mxu0
    %v3221 = vpop.f32.mrf.mxu0
    %v3222 = vadd.f32 %v3086, %v3221
    %v3223 = vpop.f32.mrf.mxu0
    %3224 = vdwg.mxu0
    %3225 = vst [vmem:[#allocation14] sm:$0xff] %v3219
    %3226 = vst [vmem:[#allocation14 + $0x8] sm:$0xff] %v3222
    // Predicated region
    $region58: #{tpu_custom_call.1} parent=1 // pred_check
      _
    $region59: #{tpu_custom_call.1} parent=1 // pred_check_branch
      %3228 = sbr.rel (0) target = $region61
    $region60: #{tpu_custom_call.1} parent=1 // pred_region
      %s3230 = ssub.s32 256, 256
      %3231 = vsyncadd [#allocation4], %s3230
      %s3232 = sshll.u32 [#allocation14], 4
      %s3233 = int_to_ptr.vmem [resolvable:$true] %s3232
      %3238 = dma.vmem_to_hbm [thread:$0]  %s3233, 256, %s7, [#allocation4], 128, 128, 8
    $region61: #{tpu_custom_call.1} parent=1 // pred_fallthru
      _
    // Predicated region
    $region62: #{tpu_custom_call.1} parent=1 // pred_check
      _
    $region63: #{tpu_custom_call.1} parent=1 // pred_check_branch
      %3240 = sbr.rel (0) target = $region65
    $region64: #{tpu_custom_call.1} parent=1 // pred_region
      %3241 = dma.done [#allocation4], 256
    $region65: #{tpu_custom_call.1} parent=1 // pred_fallthru
      _
    %3242 = vsyncpa [#allocation3], 1
    %3243 = vsyncpa [#allocation6], 1
    %3244 = vsyncpa [#allocation9], 1
    %3245 = vsyncpa [#allocation12], 1
    %3246 = vsyncpa [#allocation4], 1

</llo_original>
